<compile_context>
chip_gen: v5e
topology: v5e:2x2
jax: 0.10.0
libtpu: 0.0.40
codegen_flags: <defaults>
</compile_context>

<pallas_src>
import math

import jax
import jax.numpy as jnp
from jax.experimental import pallas as pl
from jax.experimental.pallas import tpu as pltpu

# ---- model hyperparameters (PyTorch __init__ defaults) ----
INPUT_DIM = 6
D_MODEL = 32
NHEAD = 2
HEAD_DIM = D_MODEL // NHEAD
D_HID = 128
NLAYERS = 2
LN_EPS = 1e-5


def _layer_norm(v, w, b):
    mu = jnp.mean(v, axis=-1, keepdims=True)
    var = jnp.mean((v - mu) ** 2, axis=-1, keepdims=True)
    return (v - mu) * jax.lax.rsqrt(var + LN_EPS) * w + b


def transformer_encoder_kernel(
    x_ref,            # (B, S, F)
    proj_w_ref,       # (F, D)
    proj_b_ref,       # (1, D)
    q_w_ref,          # (L*N, D, Hd)   per-head, pre-split on host
    q_b_ref,          # (L*N, 1, Hd)
    k_w_ref,          # (L*N, D, Hd)
    k_b_ref,          # (L*N, 1, Hd)
    v_w_ref,          # (L*N, D, Hd)
    v_b_ref,          # (L*N, 1, Hd)
    wo_ref,           # (L*N, Hd, D)   per-head slice of out_proj.weight.T
    wo_b_ref,         # (L, 1, D)
    lin1_w_ref,       # (L, D, H)
    lin1_b_ref,       # (L, 1, H)
    lin2_w_ref,       # (L, H, D)
    lin2_b_ref,       # (L, 1, D)
    n1_w_ref, n1_b_ref,   # (L, 1, D)
    n2_w_ref, n2_b_ref,   # (L, 1, D)
    out_w_ref,        # (D, D)
    out_b_ref,        # (1, D)
    fn_w_ref,         # (1, D)
    fn_b_ref,         # (1, D)
    o_ref,            # (B, D)
):
    B, S, F = x_ref.shape
    T = B * S
    scale = 1.0 / math.sqrt(HEAD_DIM)

    # Flatten (B, S, F) -> (B*S, F) once; all dense layers run as 2-D matmuls.
    x2d = x_ref[...].reshape(T, F).astype(jnp.float32)
    h = jnp.dot(x2d, proj_w_ref[...],
                preferred_element_type=jnp.float32) + proj_b_ref[...]      # (T, D)

    for l in range(NLAYERS):
        # ---- self-attention block (post-norm, dropout = identity) ----
        head_ctx = []
        for n in range(NHEAD):          # NHEAD=2, unrolled at trace time
            idx = l * NHEAD + n
            # Per-head projections by matmul shape: no lane slicing of a fused qkv.
            q = jnp.dot(h, q_w_ref[idx],
                        preferred_element_type=jnp.float32) + q_b_ref[idx]  # (T, Hd)
            k = jnp.dot(h, k_w_ref[idx],
                        preferred_element_type=jnp.float32) + k_b_ref[idx]
            v = jnp.dot(h, v_w_ref[idx],
                        preferred_element_type=jnp.float32) + v_b_ref[idx]
            qb = q.reshape(B, S, HEAD_DIM)      # leading-dim split only (layout-free)
            kb = k.reshape(B, S, HEAD_DIM)
            vb = v.reshape(B, S, HEAD_DIM)

            s = jnp.einsum("bqh,bkh->bqk", qb, kb,
                           preferred_element_type=jnp.float32) * scale
            # Max-subtraction kept for numerical parity with torch softmax
            # (computed once per head across the whole batch).
            s = s - jnp.max(s, axis=-1, keepdims=True)
            p = jnp.exp(s)
            # EUP approximate reciprocal instead of a VPU divide.
            p = p * pl.reciprocal(jnp.sum(p, axis=-1, keepdims=True), approx=True)
            ctx = jnp.einsum("bqk,bkh->bqh", p, vb,
                             preferred_element_type=jnp.float32)
            head_ctx.append(ctx.reshape(T, HEAD_DIM))

        # Folded output projection: sum of per-head (T,Hd) @ (Hd,D) contributions.
        attn = wo_b_ref[l]
        for n in range(NHEAD):
            attn = attn + jnp.dot(head_ctx[n], wo_ref[l * NHEAD + n],
                                  preferred_element_type=jnp.float32)
        h = _layer_norm(h + attn, n1_w_ref[l], n1_b_ref[l])

        # ---- feed-forward block (ReLU, dropout = identity), flattened over B*S ----
        ff = jnp.dot(h, lin1_w_ref[l],
                     preferred_element_type=jnp.float32) + lin1_b_ref[l]    # (T, H)
        ff = jnp.maximum(ff, 0.0)
        ff = jnp.dot(ff, lin2_w_ref[l],
                     preferred_element_type=jnp.float32) + lin2_b_ref[l]    # (T, D)
        h = _layer_norm(h + ff, n2_w_ref[l], n2_b_ref[l])

    # mean-pool over the sequence axis, output projection, final layernorm
    pooled = jnp.mean(h.reshape(B, S, D_MODEL), axis=1)                     # (B, D)
    out = jnp.dot(pooled, out_w_ref[...],
                  preferred_element_type=jnp.float32) + out_b_ref[...]
    o_ref[...] = _layer_norm(out, fn_w_ref[...], fn_b_ref[...])


def pack_params(p):
    """Host-side conversion from torch-style storage (out_features, in_features) to
    the kernel layout: everything pre-transposed to (in, out) and the attention
    in_proj / out_proj weights pre-split per head so the kernel never lane-slices."""
    L, N, D, Hd, H = NLAYERS, NHEAD, D_MODEL, HEAD_DIM, D_HID

    in_w = p["in_proj_w"]                # (L, 3D, D), rows = [q; k; v]
    in_b = p["in_proj_b"]                # (L, 3D)

    def split_heads_w(block):            # (L, D_out, D_in) -> (L*N, D_in, Hd)
        wt = jnp.transpose(block, (0, 2, 1))                       # (L, D_in, D_out)
        return wt.reshape(L, D, N, Hd).transpose(0, 2, 1, 3).reshape(L * N, D, Hd)

    def split_heads_b(block):            # (L, D) -> (L*N, 1, Hd)
        return block.reshape(L, N, Hd).reshape(L * N, 1, Hd)

    q_w = split_heads_w(in_w[:, 0 * D:1 * D, :])
    k_w = split_heads_w(in_w[:, 1 * D:2 * D, :])
    v_w = split_heads_w(in_w[:, 2 * D:3 * D, :])
    q_b = split_heads_b(in_b[:, 0 * D:1 * D])
    k_b = split_heads_b(in_b[:, 1 * D:2 * D])
    v_b = split_heads_b(in_b[:, 2 * D:3 * D])

    # out_proj: attn = concat_heads(ctx) @ W_o.T + b_o ; head n uses rows n*Hd:(n+1)*Hd
    # of W_o.T, i.e. columns n*Hd:(n+1)*Hd of W_o.
    wo = jnp.transpose(p["out_proj_w"], (0, 2, 1))                 # (L, D_in, D_out)
    wo = wo.reshape(L, N, Hd, D).reshape(L * N, Hd, D)

    return (
        jnp.transpose(p["proj_w"]),                  # (F, D)
        p["proj_b"].reshape(1, D),
        q_w, q_b, k_w, k_b, v_w, v_b,
        wo, p["out_proj_b"].reshape(L, 1, D),
        jnp.transpose(p["linear1_w"], (0, 2, 1)),    # (L, D, H)
        p["linear1_b"].reshape(L, 1, H),
        jnp.transpose(p["linear2_w"], (0, 2, 1)),    # (L, H, D)
        p["linear2_b"].reshape(L, 1, D),
        p["norm1_w"].reshape(L, 1, D), p["norm1_b"].reshape(L, 1, D),
        p["norm2_w"].reshape(L, 1, D), p["norm2_b"].reshape(L, 1, D),
        jnp.transpose(p["outp_w"]),                  # (D, D)
        p["outp_b"].reshape(1, D),
        p["final_norm_w"].reshape(1, D),
        p["final_norm_b"].reshape(1, D),
    )


def _cost_estimate(B, S, inputs):
    T = B * S
    flops = 2 * T * INPUT_DIM * D_MODEL                          # input projection
    per_layer = (
        2 * T * D_MODEL * (3 * D_MODEL)                          # q/k/v projections
        + 2 * NHEAD * B * (2 * S * S * HEAD_DIM)                 # scores + context
        + 2 * T * D_MODEL * D_MODEL                              # attn out projection
        + 2 * 2 * T * D_MODEL * D_HID                            # linear1 + linear2
    )
    flops += NLAYERS * per_layer
    flops += 2 * B * D_MODEL * D_MODEL                           # outp Linear
    transcendentals = (
        NLAYERS * NHEAD * B * S * S                              # exp
        + NLAYERS * NHEAD * B * S                                # approx reciprocal
        + 2 * NLAYERS * T + B                                    # layernorm rsqrt
    )
    bytes_accessed = sum(int(a.size) * a.dtype.itemsize for a in inputs) \
        + B * D_MODEL * 4
    return pl.CostEstimate(flops=int(flops),
                           transcendentals=int(transcendentals),
                           bytes_accessed=int(bytes_accessed))


def transformer_encoder_forward(x, params):
    B, S, _ = x.shape
    inputs = (x,) + pack_params(params)
    # Tiny problem (a few hundred KB total): single invocation, fully VMEM-resident,
    # no grid / tiling.  (If batch grows on v7x, add a parallel grid axis over B*S
    # blocks with weights on constant-index BlockSpecs.)
    vmem = pl.BlockSpec(memory_space=pltpu.MemorySpace.VMEM)
    return pl.pallas_call(
        transformer_encoder_kernel,
        out_shape=jax.ShapeDtypeStruct((B, D_MODEL), jnp.float32),
        in_specs=[vmem] * len(inputs),
        out_specs=vmem,
        cost_estimate=_cost_estimate(B, S, inputs),
    )(*inputs)


def init_params(key):
    """Deterministic synthetic parameters stored in torch layout
    (Linear.weight = (out_features, in_features), fused in_proj like nn.MultiheadAttention)."""
    ks = jax.random.split(key, 12)
    sc = 0.05

    def w(k, shape):
        return (sc * jax.random.normal(k, shape)).astype(jnp.float32)

    return {
        "proj_w": w(ks[0], (D_MODEL, INPUT_DIM)),
        "proj_b": w(ks[1], (D_MODEL,)),
        "in_proj_w": w(ks[2], (NLAYERS, 3 * D_MODEL, D_MODEL)),
        "in_proj_b": w(ks[3], (NLAYERS, 3 * D_MODEL)),
        "out_proj_w": w(ks[4], (NLAYERS, D_MODEL, D_MODEL)),
        "out_proj_b": w(ks[5], (NLAYERS, D_MODEL)),
        "linear1_w": w(ks[6], (NLAYERS, D_HID, D_MODEL)),
        "linear1_b": w(ks[7], (NLAYERS, D_HID)),
        "linear2_w": w(ks[8], (NLAYERS, D_MODEL, D_HID)),
        "linear2_b": w(ks[9], (NLAYERS, D_MODEL)),
        "norm1_w": jnp.ones((NLAYERS, D_MODEL), jnp.float32),
        "norm1_b": jnp.zeros((NLAYERS, D_MODEL), jnp.float32),
        "norm2_w": jnp.ones((NLAYERS, D_MODEL), jnp.float32),
        "norm2_b": jnp.zeros((NLAYERS, D_MODEL), jnp.float32),
        "outp_w": w(ks[10], (D_MODEL, D_MODEL)),
        "outp_b": w(ks[11], (D_MODEL,)),
        "final_norm_w": jnp.ones((D_MODEL,), jnp.float32),
        "final_norm_b": jnp.zeros((D_MODEL,), jnp.float32),
    }


if __name__ == "__main__":
    key = jax.random.PRNGKey(0)
    k_x, k_p = jax.random.split(key)

    B, S = 2, 8
    x = jax.random.normal(k_x, (B, S, INPUT_DIM), dtype=jnp.float32)
    params = init_params(k_p)

    out = transformer_encoder_forward(x, params)
    out = jax.block_until_ready(out)
    assert out.shape == (B, D_MODEL) and out.dtype == jnp.float32
    assert bool(jnp.all(jnp.isfinite(out)))
    # TODO(synk): dropout layers are treated as identity (eval-mode semantics).
    print("KERNEL_OK")
</pallas_src>

<mosaic_0001>
module attributes {stable_mosaic.version = 11 : i64} {
  func.func @transformer_encoder_kernel(%arg0: memref<2x8x6xf32, #tpu.memory_space<vmem>>, %arg1: memref<6x32xf32, #tpu.memory_space<vmem>>, %arg2: memref<1x32xf32, #tpu.memory_space<vmem>>, %arg3: memref<4x32x16xf32, #tpu.memory_space<vmem>>, %arg4: memref<4x1x16xf32, #tpu.memory_space<vmem>>, %arg5: memref<4x32x16xf32, #tpu.memory_space<vmem>>, %arg6: memref<4x1x16xf32, #tpu.memory_space<vmem>>, %arg7: memref<4x32x16xf32, #tpu.memory_space<vmem>>, %arg8: memref<4x1x16xf32, #tpu.memory_space<vmem>>, %arg9: memref<4x16x32xf32, #tpu.memory_space<vmem>>, %arg10: memref<2x1x32xf32, #tpu.memory_space<vmem>>, %arg11: memref<2x32x128xf32, #tpu.memory_space<vmem>>, %arg12: memref<2x1x128xf32, #tpu.memory_space<vmem>>, %arg13: memref<2x128x32xf32, #tpu.memory_space<vmem>>, %arg14: memref<2x1x32xf32, #tpu.memory_space<vmem>>, %arg15: memref<2x1x32xf32, #tpu.memory_space<vmem>>, %arg16: memref<2x1x32xf32, #tpu.memory_space<vmem>>, %arg17: memref<2x1x32xf32, #tpu.memory_space<vmem>>, %arg18: memref<2x1x32xf32, #tpu.memory_space<vmem>>, %arg19: memref<32x32xf32, #tpu.memory_space<vmem>>, %arg20: memref<1x32xf32, #tpu.memory_space<vmem>>, %arg21: memref<1x32xf32, #tpu.memory_space<vmem>>, %arg22: memref<1x32xf32, #tpu.memory_space<vmem>>, %arg23: memref<2x32xf32, #tpu.memory_space<vmem>>) attributes {dimension_semantics = [], scalar_prefetch = 0 : i64, scratch_operands = 0 : i64, tpu.core_type = #tpu.core_type<tc>} {
    %c0 = arith.constant 0 : index
    %c0_0 = arith.constant 0 : index
    %c0_1 = arith.constant 0 : index
    %0 = vector.load %arg0[%c0, %c0_0, %c0_1] : memref<2x8x6xf32, #tpu.memory_space<vmem>>, vector<2x8x6xf32>
    %1 = vector.shape_cast %0 : vector<2x8x6xf32> to vector<16x6xf32>
    %c0_2 = arith.constant 0 : index
    %c0_3 = arith.constant 0 : index
    %2 = vector.load %arg1[%c0_2, %c0_3] : memref<6x32xf32, #tpu.memory_space<vmem>>, vector<6x32xf32>
    %cst = arith.constant dense<0.000000e+00> : vector<16x32xf32>
    %3 = tpu.matmul %1, %2, %cst {dimension_numbers = #tpu.dot_dimension_numbers<[1], [0], [0], [1], [0, 0, 1, 1], [], []>} : vector<16x6xf32>, vector<6x32xf32>, vector<16x32xf32> -> vector<16x32xf32>
    %c0_4 = arith.constant 0 : index
    %c0_5 = arith.constant 0 : index
    %4 = vector.load %arg2[%c0_4, %c0_5] : memref<1x32xf32, #tpu.memory_space<vmem>>, vector<1x32xf32>
    %5 = vector.broadcast %4 : vector<1x32xf32> to vector<16x32xf32>
    %6 = arith.addf %3, %5 : vector<16x32xf32>
    %c0_6 = arith.constant 0 : index
    %c0_7 = arith.constant 0 : index
    %c0_8 = arith.constant 0 : index
    %7 = vector.load %arg3[%c0_6, %c0_7, %c0_8] : memref<4x32x16xf32, #tpu.memory_space<vmem>>, vector<1x32x16xf32>
    %8 = vector.shape_cast %7 : vector<1x32x16xf32> to vector<32x16xf32>
    %cst_9 = arith.constant dense<0.000000e+00> : vector<16x16xf32>
    %9 = tpu.matmul %6, %8, %cst_9 {dimension_numbers = #tpu.dot_dimension_numbers<[1], [0], [0], [1], [0, 0, 1, 1], [], []>} : vector<16x32xf32>, vector<32x16xf32>, vector<16x16xf32> -> vector<16x16xf32>
    %c0_10 = arith.constant 0 : index
    %c0_11 = arith.constant 0 : index
    %c0_12 = arith.constant 0 : index
    %10 = vector.load %arg4[%c0_10, %c0_11, %c0_12] : memref<4x1x16xf32, #tpu.memory_space<vmem>>, vector<1x1x16xf32>
    %11 = vector.shape_cast %10 : vector<1x1x16xf32> to vector<1x16xf32>
    %12 = vector.broadcast %11 : vector<1x16xf32> to vector<16x16xf32>
    %13 = arith.addf %9, %12 : vector<16x16xf32>
    %c0_13 = arith.constant 0 : index
    %c0_14 = arith.constant 0 : index
    %c0_15 = arith.constant 0 : index
    %14 = vector.load %arg5[%c0_13, %c0_14, %c0_15] : memref<4x32x16xf32, #tpu.memory_space<vmem>>, vector<1x32x16xf32>
    %15 = vector.shape_cast %14 : vector<1x32x16xf32> to vector<32x16xf32>
    %cst_16 = arith.constant dense<0.000000e+00> : vector<16x16xf32>
    %16 = tpu.matmul %6, %15, %cst_16 {dimension_numbers = #tpu.dot_dimension_numbers<[1], [0], [0], [1], [0, 0, 1, 1], [], []>} : vector<16x32xf32>, vector<32x16xf32>, vector<16x16xf32> -> vector<16x16xf32>
    %c0_17 = arith.constant 0 : index
    %c0_18 = arith.constant 0 : index
    %c0_19 = arith.constant 0 : index
    %17 = vector.load %arg6[%c0_17, %c0_18, %c0_19] : memref<4x1x16xf32, #tpu.memory_space<vmem>>, vector<1x1x16xf32>
    %18 = vector.shape_cast %17 : vector<1x1x16xf32> to vector<1x16xf32>
    %19 = vector.broadcast %18 : vector<1x16xf32> to vector<16x16xf32>
    %20 = arith.addf %16, %19 : vector<16x16xf32>
    %c0_20 = arith.constant 0 : index
    %c0_21 = arith.constant 0 : index
    %c0_22 = arith.constant 0 : index
    %21 = vector.load %arg7[%c0_20, %c0_21, %c0_22] : memref<4x32x16xf32, #tpu.memory_space<vmem>>, vector<1x32x16xf32>
    %22 = vector.shape_cast %21 : vector<1x32x16xf32> to vector<32x16xf32>
    %cst_23 = arith.constant dense<0.000000e+00> : vector<16x16xf32>
    %23 = tpu.matmul %6, %22, %cst_23 {dimension_numbers = #tpu.dot_dimension_numbers<[1], [0], [0], [1], [0, 0, 1, 1], [], []>} : vector<16x32xf32>, vector<32x16xf32>, vector<16x16xf32> -> vector<16x16xf32>
    %c0_24 = arith.constant 0 : index
    %c0_25 = arith.constant 0 : index
    %c0_26 = arith.constant 0 : index
    %24 = vector.load %arg8[%c0_24, %c0_25, %c0_26] : memref<4x1x16xf32, #tpu.memory_space<vmem>>, vector<1x1x16xf32>
    %25 = vector.shape_cast %24 : vector<1x1x16xf32> to vector<1x16xf32>
    %26 = vector.broadcast %25 : vector<1x16xf32> to vector<16x16xf32>
    %27 = arith.addf %23, %26 : vector<16x16xf32>
    %28 = vector.shape_cast %13 : vector<16x16xf32> to vector<2x8x16xf32>
    %29 = vector.shape_cast %20 : vector<16x16xf32> to vector<2x8x16xf32>
    %30 = vector.shape_cast %27 : vector<16x16xf32> to vector<2x8x16xf32>
    "tpu.trace_start"() <{level = 10 : i32, message = "bqh,bkh->bqk"}> : () -> ()
    %cst_27 = arith.constant dense<0.000000e+00> : vector<2x8x8xf32>
    %31 = tpu.matmul %28, %29, %cst_27 {dimension_numbers = #tpu.dot_dimension_numbers<[2], [2], [1], [1], [0, 0, 0, 1, 1, 1], [0], [0]>} : vector<2x8x16xf32>, vector<2x8x16xf32>, vector<2x8x8xf32> -> vector<2x8x8xf32>
    "tpu.trace_stop"() : () -> ()
    %cst_28 = arith.constant 2.500000e-01 : f32
    %32 = vector.broadcast %cst_28 : f32 to vector<2x8x8xf32>
    %33 = arith.mulf %31, %32 : vector<2x8x8xf32>
    %cst_29 = arith.constant dense<0xFF800000> : vector<2x8xf32>
    %34 = vector.multi_reduction <maximumf>, %33, %cst_29 [2] : vector<2x8x8xf32> to vector<2x8xf32>
    %35 = vector.shape_cast %34 : vector<2x8xf32> to vector<2x8x1xf32>
    %36 = vector.broadcast %35 : vector<2x8x1xf32> to vector<2x8x8xf32>
    %37 = arith.subf %33, %36 : vector<2x8x8xf32>
    %38 = math.exp %37 : vector<2x8x8xf32>
    %cst_30 = arith.constant dense<0.000000e+00> : vector<2x8xf32>
    %39 = vector.multi_reduction <add>, %38, %cst_30 [2] : vector<2x8x8xf32> to vector<2x8xf32>
    %40 = vector.shape_cast %39 : vector<2x8xf32> to vector<2x8x1xf32>
    %41 = tpu.reciprocal %40 {approx = true} : vector<2x8x1xf32> -> vector<2x8x1xf32>
    %42 = vector.broadcast %41 : vector<2x8x1xf32> to vector<2x8x8xf32>
    %43 = arith.mulf %38, %42 : vector<2x8x8xf32>
    "tpu.trace_start"() <{level = 10 : i32, message = "bqk,bkh->bqh"}> : () -> ()
    %cst_31 = arith.constant dense<0.000000e+00> : vector<2x8x16xf32>
    %44 = tpu.matmul %43, %30, %cst_31 {dimension_numbers = #tpu.dot_dimension_numbers<[2], [1], [1], [2], [0, 0, 0, 1, 1, 2], [0], [0]>} : vector<2x8x8xf32>, vector<2x8x16xf32>, vector<2x8x16xf32> -> vector<2x8x16xf32>
    "tpu.trace_stop"() : () -> ()
    %45 = vector.shape_cast %44 : vector<2x8x16xf32> to vector<16x16xf32>
    %c1 = arith.constant 1 : index
    %c0_32 = arith.constant 0 : index
    %c0_33 = arith.constant 0 : index
    %46 = vector.load %arg3[%c1, %c0_32, %c0_33] : memref<4x32x16xf32, #tpu.memory_space<vmem>>, vector<1x32x16xf32>
    %47 = vector.shape_cast %46 : vector<1x32x16xf32> to vector<32x16xf32>
    %cst_34 = arith.constant dense<0.000000e+00> : vector<16x16xf32>
    %48 = tpu.matmul %6, %47, %cst_34 {dimension_numbers = #tpu.dot_dimension_numbers<[1], [0], [0], [1], [0, 0, 1, 1], [], []>} : vector<16x32xf32>, vector<32x16xf32>, vector<16x16xf32> -> vector<16x16xf32>
    %c1_35 = arith.constant 1 : index
    %c0_36 = arith.constant 0 : index
    %c0_37 = arith.constant 0 : index
    %49 = vector.load %arg4[%c1_35, %c0_36, %c0_37] : memref<4x1x16xf32, #tpu.memory_space<vmem>>, vector<1x1x16xf32>
    %50 = vector.shape_cast %49 : vector<1x1x16xf32> to vector<1x16xf32>
    %51 = vector.broadcast %50 : vector<1x16xf32> to vector<16x16xf32>
    %52 = arith.addf %48, %51 : vector<16x16xf32>
    %c1_38 = arith.constant 1 : index
    %c0_39 = arith.constant 0 : index
    %c0_40 = arith.constant 0 : index
    %53 = vector.load %arg5[%c1_38, %c0_39, %c0_40] : memref<4x32x16xf32, #tpu.memory_space<vmem>>, vector<1x32x16xf32>
    %54 = vector.shape_cast %53 : vector<1x32x16xf32> to vector<32x16xf32>
    %cst_41 = arith.constant dense<0.000000e+00> : vector<16x16xf32>
    %55 = tpu.matmul %6, %54, %cst_41 {dimension_numbers = #tpu.dot_dimension_numbers<[1], [0], [0], [1], [0, 0, 1, 1], [], []>} : vector<16x32xf32>, vector<32x16xf32>, vector<16x16xf32> -> vector<16x16xf32>
    %c1_42 = arith.constant 1 : index
    %c0_43 = arith.constant 0 : index
    %c0_44 = arith.constant 0 : index
    %56 = vector.load %arg6[%c1_42, %c0_43, %c0_44] : memref<4x1x16xf32, #tpu.memory_space<vmem>>, vector<1x1x16xf32>
    %57 = vector.shape_cast %56 : vector<1x1x16xf32> to vector<1x16xf32>
    %58 = vector.broadcast %57 : vector<1x16xf32> to vector<16x16xf32>
    %59 = arith.addf %55, %58 : vector<16x16xf32>
    %c1_45 = arith.constant 1 : index
    %c0_46 = arith.constant 0 : index
    %c0_47 = arith.constant 0 : index
    %60 = vector.load %arg7[%c1_45, %c0_46, %c0_47] : memref<4x32x16xf32, #tpu.memory_space<vmem>>, vector<1x32x16xf32>
    %61 = vector.shape_cast %60 : vector<1x32x16xf32> to vector<32x16xf32>
    %cst_48 = arith.constant dense<0.000000e+00> : vector<16x16xf32>
    %62 = tpu.matmul %6, %61, %cst_48 {dimension_numbers = #tpu.dot_dimension_numbers<[1], [0], [0], [1], [0, 0, 1, 1], [], []>} : vector<16x32xf32>, vector<32x16xf32>, vector<16x16xf32> -> vector<16x16xf32>
    %c1_49 = arith.constant 1 : index
    %c0_50 = arith.constant 0 : index
    %c0_51 = arith.constant 0 : index
    %63 = vector.load %arg8[%c1_49, %c0_50, %c0_51] : memref<4x1x16xf32, #tpu.memory_space<vmem>>, vector<1x1x16xf32>
    %64 = vector.shape_cast %63 : vector<1x1x16xf32> to vector<1x16xf32>
    %65 = vector.broadcast %64 : vector<1x16xf32> to vector<16x16xf32>
    %66 = arith.addf %62, %65 : vector<16x16xf32>
    %67 = vector.shape_cast %52 : vector<16x16xf32> to vector<2x8x16xf32>
    %68 = vector.shape_cast %59 : vector<16x16xf32> to vector<2x8x16xf32>
    %69 = vector.shape_cast %66 : vector<16x16xf32> to vector<2x8x16xf32>
    "tpu.trace_start"() <{level = 10 : i32, message = "bqh,bkh->bqk"}> : () -> ()
    %cst_52 = arith.constant dense<0.000000e+00> : vector<2x8x8xf32>
    %70 = tpu.matmul %67, %68, %cst_52 {dimension_numbers = #tpu.dot_dimension_numbers<[2], [2], [1], [1], [0, 0, 0, 1, 1, 1], [0], [0]>} : vector<2x8x16xf32>, vector<2x8x16xf32>, vector<2x8x8xf32> -> vector<2x8x8xf32>
    "tpu.trace_stop"() : () -> ()
    %cst_53 = arith.constant 2.500000e-01 : f32
    %71 = vector.broadcast %cst_53 : f32 to vector<2x8x8xf32>
    %72 = arith.mulf %70, %71 : vector<2x8x8xf32>
    %cst_54 = arith.constant dense<0xFF800000> : vector<2x8xf32>
    %73 = vector.multi_reduction <maximumf>, %72, %cst_54 [2] : vector<2x8x8xf32> to vector<2x8xf32>
    %74 = vector.shape_cast %73 : vector<2x8xf32> to vector<2x8x1xf32>
    %75 = vector.broadcast %74 : vector<2x8x1xf32> to vector<2x8x8xf32>
    %76 = arith.subf %72, %75 : vector<2x8x8xf32>
    %77 = math.exp %76 : vector<2x8x8xf32>
    %cst_55 = arith.constant dense<0.000000e+00> : vector<2x8xf32>
    %78 = vector.multi_reduction <add>, %77, %cst_55 [2] : vector<2x8x8xf32> to vector<2x8xf32>
    %79 = vector.shape_cast %78 : vector<2x8xf32> to vector<2x8x1xf32>
    %80 = tpu.reciprocal %79 {approx = true} : vector<2x8x1xf32> -> vector<2x8x1xf32>
    %81 = vector.broadcast %80 : vector<2x8x1xf32> to vector<2x8x8xf32>
    %82 = arith.mulf %77, %81 : vector<2x8x8xf32>
    "tpu.trace_start"() <{level = 10 : i32, message = "bqk,bkh->bqh"}> : () -> ()
    %cst_56 = arith.constant dense<0.000000e+00> : vector<2x8x16xf32>
    %83 = tpu.matmul %82, %69, %cst_56 {dimension_numbers = #tpu.dot_dimension_numbers<[2], [1], [1], [2], [0, 0, 0, 1, 1, 2], [0], [0]>} : vector<2x8x8xf32>, vector<2x8x16xf32>, vector<2x8x16xf32> -> vector<2x8x16xf32>
    "tpu.trace_stop"() : () -> ()
    %84 = vector.shape_cast %83 : vector<2x8x16xf32> to vector<16x16xf32>
    %c0_57 = arith.constant 0 : index
    %c0_58 = arith.constant 0 : index
    %c0_59 = arith.constant 0 : index
    %85 = vector.load %arg10[%c0_57, %c0_58, %c0_59] : memref<2x1x32xf32, #tpu.memory_space<vmem>>, vector<1x1x32xf32>
    %86 = vector.shape_cast %85 : vector<1x1x32xf32> to vector<1x32xf32>
    %c0_60 = arith.constant 0 : index
    %c0_61 = arith.constant 0 : index
    %c0_62 = arith.constant 0 : index
    %87 = vector.load %arg9[%c0_60, %c0_61, %c0_62] : memref<4x16x32xf32, #tpu.memory_space<vmem>>, vector<1x16x32xf32>
    %88 = vector.shape_cast %87 : vector<1x16x32xf32> to vector<16x32xf32>
    %cst_63 = arith.constant dense<0.000000e+00> : vector<16x32xf32>
    %89 = tpu.matmul %45, %88, %cst_63 {dimension_numbers = #tpu.dot_dimension_numbers<[1], [0], [0], [1], [0, 0, 1, 1], [], []>} : vector<16x16xf32>, vector<16x32xf32>, vector<16x32xf32> -> vector<16x32xf32>
    %90 = vector.broadcast %86 : vector<1x32xf32> to vector<16x32xf32>
    %91 = arith.addf %90, %89 : vector<16x32xf32>
    %c1_64 = arith.constant 1 : index
    %c0_65 = arith.constant 0 : index
    %c0_66 = arith.constant 0 : index
    %92 = vector.load %arg9[%c1_64, %c0_65, %c0_66] : memref<4x16x32xf32, #tpu.memory_space<vmem>>, vector<1x16x32xf32>
    %93 = vector.shape_cast %92 : vector<1x16x32xf32> to vector<16x32xf32>
    %cst_67 = arith.constant dense<0.000000e+00> : vector<16x32xf32>
    %94 = tpu.matmul %84, %93, %cst_67 {dimension_numbers = #tpu.dot_dimension_numbers<[1], [0], [0], [1], [0, 0, 1, 1], [], []>} : vector<16x16xf32>, vector<16x32xf32>, vector<16x32xf32> -> vector<16x32xf32>
    %95 = arith.addf %91, %94 : vector<16x32xf32>
    %96 = arith.addf %6, %95 : vector<16x32xf32>
    %c0_68 = arith.constant 0 : index
    %c0_69 = arith.constant 0 : index
    %c0_70 = arith.constant 0 : index
    %97 = vector.load %arg15[%c0_68, %c0_69, %c0_70] : memref<2x1x32xf32, #tpu.memory_space<vmem>>, vector<1x1x32xf32>
    %98 = vector.shape_cast %97 : vector<1x1x32xf32> to vector<1x32xf32>
    %c0_71 = arith.constant 0 : index
    %c0_72 = arith.constant 0 : index
    %c0_73 = arith.constant 0 : index
    %99 = vector.load %arg16[%c0_71, %c0_72, %c0_73] : memref<2x1x32xf32, #tpu.memory_space<vmem>>, vector<1x1x32xf32>
    %100 = vector.shape_cast %99 : vector<1x1x32xf32> to vector<1x32xf32>
    %cst_74 = arith.constant dense<0.000000e+00> : vector<16xf32>
    %101 = vector.multi_reduction <add>, %96, %cst_74 [1] : vector<16x32xf32> to vector<16xf32>
    %102 = vector.shape_cast %101 : vector<16xf32> to vector<16x1xf32>
    %cst_75 = arith.constant 3.200000e+01 : f32
    %103 = vector.broadcast %cst_75 : f32 to vector<16x1xf32>
    %104 = arith.divf %102, %103 : vector<16x1xf32>
    %105 = vector.broadcast %104 : vector<16x1xf32> to vector<16x32xf32>
    %106 = arith.subf %96, %105 : vector<16x32xf32>
    %107 = arith.mulf %106, %106 : vector<16x32xf32>
    %cst_76 = arith.constant dense<0.000000e+00> : vector<16xf32>
    %108 = vector.multi_reduction <add>, %107, %cst_76 [1] : vector<16x32xf32> to vector<16xf32>
    %109 = vector.shape_cast %108 : vector<16xf32> to vector<16x1xf32>
    %cst_77 = arith.constant 3.200000e+01 : f32
    %110 = vector.broadcast %cst_77 : f32 to vector<16x1xf32>
    %111 = arith.divf %109, %110 : vector<16x1xf32>
    %112 = vector.broadcast %104 : vector<16x1xf32> to vector<16x32xf32>
    %113 = arith.subf %96, %112 : vector<16x32xf32>
    %cst_78 = arith.constant 9.99999974E-6 : f32
    %114 = vector.broadcast %cst_78 : f32 to vector<16x1xf32>
    %115 = arith.addf %111, %114 : vector<16x1xf32>
    %116 = math.rsqrt %115 : vector<16x1xf32>
    %117 = vector.broadcast %116 : vector<16x1xf32> to vector<16x32xf32>
    %118 = arith.mulf %113, %117 : vector<16x32xf32>
    %119 = vector.broadcast %98 : vector<1x32xf32> to vector<16x32xf32>
    %120 = arith.mulf %118, %119 : vector<16x32xf32>
    %121 = vector.broadcast %100 : vector<1x32xf32> to vector<16x32xf32>
    %122 = arith.addf %120, %121 : vector<16x32xf32>
    %c0_79 = arith.constant 0 : index
    %c0_80 = arith.constant 0 : index
    %c0_81 = arith.constant 0 : index
    %123 = vector.load %arg11[%c0_79, %c0_80, %c0_81] : memref<2x32x128xf32, #tpu.memory_space<vmem>>, vector<1x32x128xf32>
    %124 = vector.shape_cast %123 : vector<1x32x128xf32> to vector<32x128xf32>
    %cst_82 = arith.constant dense<0.000000e+00> : vector<16x128xf32>
    %125 = tpu.matmul %122, %124, %cst_82 {dimension_numbers = #tpu.dot_dimension_numbers<[1], [0], [0], [1], [0, 0, 1, 1], [], []>} : vector<16x32xf32>, vector<32x128xf32>, vector<16x128xf32> -> vector<16x128xf32>
    %c0_83 = arith.constant 0 : index
    %c0_84 = arith.constant 0 : index
    %c0_85 = arith.constant 0 : index
    %126 = vector.load %arg12[%c0_83, %c0_84, %c0_85] : memref<2x1x128xf32, #tpu.memory_space<vmem>>, vector<1x1x128xf32>
    %127 = vector.shape_cast %126 : vector<1x1x128xf32> to vector<1x128xf32>
    %128 = vector.broadcast %127 : vector<1x128xf32> to vector<16x128xf32>
    %129 = arith.addf %125, %128 : vector<16x128xf32>
    %cst_86 = arith.constant 0.000000e+00 : f32
    %130 = vector.broadcast %cst_86 : f32 to vector<16x128xf32>
    %131 = arith.maximumf %129, %130 : vector<16x128xf32>
    %c0_87 = arith.constant 0 : index
    %c0_88 = arith.constant 0 : index
    %c0_89 = arith.constant 0 : index
    %132 = vector.load %arg13[%c0_87, %c0_88, %c0_89] : memref<2x128x32xf32, #tpu.memory_space<vmem>>, vector<1x128x32xf32>
    %133 = vector.shape_cast %132 : vector<1x128x32xf32> to vector<128x32xf32>
    %cst_90 = arith.constant dense<0.000000e+00> : vector<16x32xf32>
    %134 = tpu.matmul %131, %133, %cst_90 {dimension_numbers = #tpu.dot_dimension_numbers<[1], [0], [0], [1], [0, 0, 1, 1], [], []>} : vector<16x128xf32>, vector<128x32xf32>, vector<16x32xf32> -> vector<16x32xf32>
    %c0_91 = arith.constant 0 : index
    %c0_92 = arith.constant 0 : index
    %c0_93 = arith.constant 0 : index
    %135 = vector.load %arg14[%c0_91, %c0_92, %c0_93] : memref<2x1x32xf32, #tpu.memory_space<vmem>>, vector<1x1x32xf32>
    %136 = vector.shape_cast %135 : vector<1x1x32xf32> to vector<1x32xf32>
    %137 = vector.broadcast %136 : vector<1x32xf32> to vector<16x32xf32>
    %138 = arith.addf %134, %137 : vector<16x32xf32>
    %139 = arith.addf %122, %138 : vector<16x32xf32>
    %c0_94 = arith.constant 0 : index
    %c0_95 = arith.constant 0 : index
    %c0_96 = arith.constant 0 : index
    %140 = vector.load %arg17[%c0_94, %c0_95, %c0_96] : memref<2x1x32xf32, #tpu.memory_space<vmem>>, vector<1x1x32xf32>
    %141 = vector.shape_cast %140 : vector<1x1x32xf32> to vector<1x32xf32>
    %c0_97 = arith.constant 0 : index
    %c0_98 = arith.constant 0 : index
    %c0_99 = arith.constant 0 : index
    %142 = vector.load %arg18[%c0_97, %c0_98, %c0_99] : memref<2x1x32xf32, #tpu.memory_space<vmem>>, vector<1x1x32xf32>
    %143 = vector.shape_cast %142 : vector<1x1x32xf32> to vector<1x32xf32>
    %cst_100 = arith.constant dense<0.000000e+00> : vector<16xf32>
    %144 = vector.multi_reduction <add>, %139, %cst_100 [1] : vector<16x32xf32> to vector<16xf32>
    %145 = vector.shape_cast %144 : vector<16xf32> to vector<16x1xf32>
    %cst_101 = arith.constant 3.200000e+01 : f32
    %146 = vector.broadcast %cst_101 : f32 to vector<16x1xf32>
    %147 = arith.divf %145, %146 : vector<16x1xf32>
    %148 = vector.broadcast %147 : vector<16x1xf32> to vector<16x32xf32>
    %149 = arith.subf %139, %148 : vector<16x32xf32>
    %150 = arith.mulf %149, %149 : vector<16x32xf32>
    %cst_102 = arith.constant dense<0.000000e+00> : vector<16xf32>
    %151 = vector.multi_reduction <add>, %150, %cst_102 [1] : vector<16x32xf32> to vector<16xf32>
    %152 = vector.shape_cast %151 : vector<16xf32> to vector<16x1xf32>
    %cst_103 = arith.constant 3.200000e+01 : f32
    %153 = vector.broadcast %cst_103 : f32 to vector<16x1xf32>
    %154 = arith.divf %152, %153 : vector<16x1xf32>
    %155 = vector.broadcast %147 : vector<16x1xf32> to vector<16x32xf32>
    %156 = arith.subf %139, %155 : vector<16x32xf32>
    %cst_104 = arith.constant 9.99999974E-6 : f32
    %157 = vector.broadcast %cst_104 : f32 to vector<16x1xf32>
    %158 = arith.addf %154, %157 : vector<16x1xf32>
    %159 = math.rsqrt %158 : vector<16x1xf32>
    %160 = vector.broadcast %159 : vector<16x1xf32> to vector<16x32xf32>
    %161 = arith.mulf %156, %160 : vector<16x32xf32>
    %162 = vector.broadcast %141 : vector<1x32xf32> to vector<16x32xf32>
    %163 = arith.mulf %161, %162 : vector<16x32xf32>
    %164 = vector.broadcast %143 : vector<1x32xf32> to vector<16x32xf32>
    %165 = arith.addf %163, %164 : vector<16x32xf32>
    %c2 = arith.constant 2 : index
    %c0_105 = arith.constant 0 : index
    %c0_106 = arith.constant 0 : index
    %166 = vector.load %arg3[%c2, %c0_105, %c0_106] : memref<4x32x16xf32, #tpu.memory_space<vmem>>, vector<1x32x16xf32>
    %167 = vector.shape_cast %166 : vector<1x32x16xf32> to vector<32x16xf32>
    %cst_107 = arith.constant dense<0.000000e+00> : vector<16x16xf32>
    %168 = tpu.matmul %165, %167, %cst_107 {dimension_numbers = #tpu.dot_dimension_numbers<[1], [0], [0], [1], [0, 0, 1, 1], [], []>} : vector<16x32xf32>, vector<32x16xf32>, vector<16x16xf32> -> vector<16x16xf32>
    %c2_108 = arith.constant 2 : index
    %c0_109 = arith.constant 0 : index
    %c0_110 = arith.constant 0 : index
    %169 = vector.load %arg4[%c2_108, %c0_109, %c0_110] : memref<4x1x16xf32, #tpu.memory_space<vmem>>, vector<1x1x16xf32>
    %170 = vector.shape_cast %169 : vector<1x1x16xf32> to vector<1x16xf32>
    %171 = vector.broadcast %170 : vector<1x16xf32> to vector<16x16xf32>
    %172 = arith.addf %168, %171 : vector<16x16xf32>
    %c2_111 = arith.constant 2 : index
    %c0_112 = arith.constant 0 : index
    %c0_113 = arith.constant 0 : index
    %173 = vector.load %arg5[%c2_111, %c0_112, %c0_113] : memref<4x32x16xf32, #tpu.memory_space<vmem>>, vector<1x32x16xf32>
    %174 = vector.shape_cast %173 : vector<1x32x16xf32> to vector<32x16xf32>
    %cst_114 = arith.constant dense<0.000000e+00> : vector<16x16xf32>
    %175 = tpu.matmul %165, %174, %cst_114 {dimension_numbers = #tpu.dot_dimension_numbers<[1], [0], [0], [1], [0, 0, 1, 1], [], []>} : vector<16x32xf32>, vector<32x16xf32>, vector<16x16xf32> -> vector<16x16xf32>
    %c2_115 = arith.constant 2 : index
    %c0_116 = arith.constant 0 : index
    %c0_117 = arith.constant 0 : index
    %176 = vector.load %arg6[%c2_115, %c0_116, %c0_117] : memref<4x1x16xf32, #tpu.memory_space<vmem>>, vector<1x1x16xf32>
    %177 = vector.shape_cast %176 : vector<1x1x16xf32> to vector<1x16xf32>
    %178 = vector.broadcast %177 : vector<1x16xf32> to vector<16x16xf32>
    %179 = arith.addf %175, %178 : vector<16x16xf32>
    %c2_118 = arith.constant 2 : index
    %c0_119 = arith.constant 0 : index
    %c0_120 = arith.constant 0 : index
    %180 = vector.load %arg7[%c2_118, %c0_119, %c0_120] : memref<4x32x16xf32, #tpu.memory_space<vmem>>, vector<1x32x16xf32>
    %181 = vector.shape_cast %180 : vector<1x32x16xf32> to vector<32x16xf32>
    %cst_121 = arith.constant dense<0.000000e+00> : vector<16x16xf32>
    %182 = tpu.matmul %165, %181, %cst_121 {dimension_numbers = #tpu.dot_dimension_numbers<[1], [0], [0], [1], [0, 0, 1, 1], [], []>} : vector<16x32xf32>, vector<32x16xf32>, vector<16x16xf32> -> vector<16x16xf32>
    %c2_122 = arith.constant 2 : index
    %c0_123 = arith.constant 0 : index
    %c0_124 = arith.constant 0 : index
    %183 = vector.load %arg8[%c2_122, %c0_123, %c0_124] : memref<4x1x16xf32, #tpu.memory_space<vmem>>, vector<1x1x16xf32>
    %184 = vector.shape_cast %183 : vector<1x1x16xf32> to vector<1x16xf32>
    %185 = vector.broadcast %184 : vector<1x16xf32> to vector<16x16xf32>
    %186 = arith.addf %182, %185 : vector<16x16xf32>
    %187 = vector.shape_cast %172 : vector<16x16xf32> to vector<2x8x16xf32>
    %188 = vector.shape_cast %179 : vector<16x16xf32> to vector<2x8x16xf32>
    %189 = vector.shape_cast %186 : vector<16x16xf32> to vector<2x8x16xf32>
    "tpu.trace_start"() <{level = 10 : i32, message = "bqh,bkh->bqk"}> : () -> ()
    %cst_125 = arith.constant dense<0.000000e+00> : vector<2x8x8xf32>
    %190 = tpu.matmul %187, %188, %cst_125 {dimension_numbers = #tpu.dot_dimension_numbers<[2], [2], [1], [1], [0, 0, 0, 1, 1, 1], [0], [0]>} : vector<2x8x16xf32>, vector<2x8x16xf32>, vector<2x8x8xf32> -> vector<2x8x8xf32>
    "tpu.trace_stop"() : () -> ()
    %cst_126 = arith.constant 2.500000e-01 : f32
    %191 = vector.broadcast %cst_126 : f32 to vector<2x8x8xf32>
    %192 = arith.mulf %190, %191 : vector<2x8x8xf32>
    %cst_127 = arith.constant dense<0xFF800000> : vector<2x8xf32>
    %193 = vector.multi_reduction <maximumf>, %192, %cst_127 [2] : vector<2x8x8xf32> to vector<2x8xf32>
    %194 = vector.shape_cast %193 : vector<2x8xf32> to vector<2x8x1xf32>
    %195 = vector.broadcast %194 : vector<2x8x1xf32> to vector<2x8x8xf32>
    %196 = arith.subf %192, %195 : vector<2x8x8xf32>
    %197 = math.exp %196 : vector<2x8x8xf32>
    %cst_128 = arith.constant dense<0.000000e+00> : vector<2x8xf32>
    %198 = vector.multi_reduction <add>, %197, %cst_128 [2] : vector<2x8x8xf32> to vector<2x8xf32>
    %199 = vector.shape_cast %198 : vector<2x8xf32> to vector<2x8x1xf32>
    %200 = tpu.reciprocal %199 {approx = true} : vector<2x8x1xf32> -> vector<2x8x1xf32>
    %201 = vector.broadcast %200 : vector<2x8x1xf32> to vector<2x8x8xf32>
    %202 = arith.mulf %197, %201 : vector<2x8x8xf32>
    "tpu.trace_start"() <{level = 10 : i32, message = "bqk,bkh->bqh"}> : () -> ()
    %cst_129 = arith.constant dense<0.000000e+00> : vector<2x8x16xf32>
    %203 = tpu.matmul %202, %189, %cst_129 {dimension_numbers = #tpu.dot_dimension_numbers<[2], [1], [1], [2], [0, 0, 0, 1, 1, 2], [0], [0]>} : vector<2x8x8xf32>, vector<2x8x16xf32>, vector<2x8x16xf32> -> vector<2x8x16xf32>
    "tpu.trace_stop"() : () -> ()
    %204 = vector.shape_cast %203 : vector<2x8x16xf32> to vector<16x16xf32>
    %c3 = arith.constant 3 : index
    %c0_130 = arith.constant 0 : index
    %c0_131 = arith.constant 0 : index
    %205 = vector.load %arg3[%c3, %c0_130, %c0_131] : memref<4x32x16xf32, #tpu.memory_space<vmem>>, vector<1x32x16xf32>
    %206 = vector.shape_cast %205 : vector<1x32x16xf32> to vector<32x16xf32>
    %cst_132 = arith.constant dense<0.000000e+00> : vector<16x16xf32>
    %207 = tpu.matmul %165, %206, %cst_132 {dimension_numbers = #tpu.dot_dimension_numbers<[1], [0], [0], [1], [0, 0, 1, 1], [], []>} : vector<16x32xf32>, vector<32x16xf32>, vector<16x16xf32> -> vector<16x16xf32>
    %c3_133 = arith.constant 3 : index
    %c0_134 = arith.constant 0 : index
    %c0_135 = arith.constant 0 : index
    %208 = vector.load %arg4[%c3_133, %c0_134, %c0_135] : memref<4x1x16xf32, #tpu.memory_space<vmem>>, vector<1x1x16xf32>
    %209 = vector.shape_cast %208 : vector<1x1x16xf32> to vector<1x16xf32>
    %210 = vector.broadcast %209 : vector<1x16xf32> to vector<16x16xf32>
    %211 = arith.addf %207, %210 : vector<16x16xf32>
    %c3_136 = arith.constant 3 : index
    %c0_137 = arith.constant 0 : index
    %c0_138 = arith.constant 0 : index
    %212 = vector.load %arg5[%c3_136, %c0_137, %c0_138] : memref<4x32x16xf32, #tpu.memory_space<vmem>>, vector<1x32x16xf32>
    %213 = vector.shape_cast %212 : vector<1x32x16xf32> to vector<32x16xf32>
    %cst_139 = arith.constant dense<0.000000e+00> : vector<16x16xf32>
    %214 = tpu.matmul %165, %213, %cst_139 {dimension_numbers = #tpu.dot_dimension_numbers<[1], [0], [0], [1], [0, 0, 1, 1], [], []>} : vector<16x32xf32>, vector<32x16xf32>, vector<16x16xf32> -> vector<16x16xf32>
    %c3_140 = arith.constant 3 : index
    %c0_141 = arith.constant 0 : index
    %c0_142 = arith.constant 0 : index
    %215 = vector.load %arg6[%c3_140, %c0_141, %c0_142] : memref<4x1x16xf32, #tpu.memory_space<vmem>>, vector<1x1x16xf32>
    %216 = vector.shape_cast %215 : vector<1x1x16xf32> to vector<1x16xf32>
    %217 = vector.broadcast %216 : vector<1x16xf32> to vector<16x16xf32>
    %218 = arith.addf %214, %217 : vector<16x16xf32>
    %c3_143 = arith.constant 3 : index
    %c0_144 = arith.constant 0 : index
    %c0_145 = arith.constant 0 : index
    %219 = vector.load %arg7[%c3_143, %c0_144, %c0_145] : memref<4x32x16xf32, #tpu.memory_space<vmem>>, vector<1x32x16xf32>
    %220 = vector.shape_cast %219 : vector<1x32x16xf32> to vector<32x16xf32>
    %cst_146 = arith.constant dense<0.000000e+00> : vector<16x16xf32>
    %221 = tpu.matmul %165, %220, %cst_146 {dimension_numbers = #tpu.dot_dimension_numbers<[1], [0], [0], [1], [0, 0, 1, 1], [], []>} : vector<16x32xf32>, vector<32x16xf32>, vector<16x16xf32> -> vector<16x16xf32>
    %c3_147 = arith.constant 3 : index
    %c0_148 = arith.constant 0 : index
    %c0_149 = arith.constant 0 : index
    %222 = vector.load %arg8[%c3_147, %c0_148, %c0_149] : memref<4x1x16xf32, #tpu.memory_space<vmem>>, vector<1x1x16xf32>
    %223 = vector.shape_cast %222 : vector<1x1x16xf32> to vector<1x16xf32>
    %224 = vector.broadcast %223 : vector<1x16xf32> to vector<16x16xf32>
    %225 = arith.addf %221, %224 : vector<16x16xf32>
    %226 = vector.shape_cast %211 : vector<16x16xf32> to vector<2x8x16xf32>
    %227 = vector.shape_cast %218 : vector<16x16xf32> to vector<2x8x16xf32>
    %228 = vector.shape_cast %225 : vector<16x16xf32> to vector<2x8x16xf32>
    "tpu.trace_start"() <{level = 10 : i32, message = "bqh,bkh->bqk"}> : () -> ()
    %cst_150 = arith.constant dense<0.000000e+00> : vector<2x8x8xf32>
    %229 = tpu.matmul %226, %227, %cst_150 {dimension_numbers = #tpu.dot_dimension_numbers<[2], [2], [1], [1], [0, 0, 0, 1, 1, 1], [0], [0]>} : vector<2x8x16xf32>, vector<2x8x16xf32>, vector<2x8x8xf32> -> vector<2x8x8xf32>
    "tpu.trace_stop"() : () -> ()
    %cst_151 = arith.constant 2.500000e-01 : f32
    %230 = vector.broadcast %cst_151 : f32 to vector<2x8x8xf32>
    %231 = arith.mulf %229, %230 : vector<2x8x8xf32>
    %cst_152 = arith.constant dense<0xFF800000> : vector<2x8xf32>
    %232 = vector.multi_reduction <maximumf>, %231, %cst_152 [2] : vector<2x8x8xf32> to vector<2x8xf32>
    %233 = vector.shape_cast %232 : vector<2x8xf32> to vector<2x8x1xf32>
    %234 = vector.broadcast %233 : vector<2x8x1xf32> to vector<2x8x8xf32>
    %235 = arith.subf %231, %234 : vector<2x8x8xf32>
    %236 = math.exp %235 : vector<2x8x8xf32>
    %cst_153 = arith.constant dense<0.000000e+00> : vector<2x8xf32>
    %237 = vector.multi_reduction <add>, %236, %cst_153 [2] : vector<2x8x8xf32> to vector<2x8xf32>
    %238 = vector.shape_cast %237 : vector<2x8xf32> to vector<2x8x1xf32>
    %239 = tpu.reciprocal %238 {approx = true} : vector<2x8x1xf32> -> vector<2x8x1xf32>
    %240 = vector.broadcast %239 : vector<2x8x1xf32> to vector<2x8x8xf32>
    %241 = arith.mulf %236, %240 : vector<2x8x8xf32>
    "tpu.trace_start"() <{level = 10 : i32, message = "bqk,bkh->bqh"}> : () -> ()
    %cst_154 = arith.constant dense<0.000000e+00> : vector<2x8x16xf32>
    %242 = tpu.matmul %241, %228, %cst_154 {dimension_numbers = #tpu.dot_dimension_numbers<[2], [1], [1], [2], [0, 0, 0, 1, 1, 2], [0], [0]>} : vector<2x8x8xf32>, vector<2x8x16xf32>, vector<2x8x16xf32> -> vector<2x8x16xf32>
    "tpu.trace_stop"() : () -> ()
    %243 = vector.shape_cast %242 : vector<2x8x16xf32> to vector<16x16xf32>
    %c1_155 = arith.constant 1 : index
    %c0_156 = arith.constant 0 : index
    %c0_157 = arith.constant 0 : index
    %244 = vector.load %arg10[%c1_155, %c0_156, %c0_157] : memref<2x1x32xf32, #tpu.memory_space<vmem>>, vector<1x1x32xf32>
    %245 = vector.shape_cast %244 : vector<1x1x32xf32> to vector<1x32xf32>
    %c2_158 = arith.constant 2 : index
    %c0_159 = arith.constant 0 : index
    %c0_160 = arith.constant 0 : index
    %246 = vector.load %arg9[%c2_158, %c0_159, %c0_160] : memref<4x16x32xf32, #tpu.memory_space<vmem>>, vector<1x16x32xf32>
    %247 = vector.shape_cast %246 : vector<1x16x32xf32> to vector<16x32xf32>
    %cst_161 = arith.constant dense<0.000000e+00> : vector<16x32xf32>
    %248 = tpu.matmul %204, %247, %cst_161 {dimension_numbers = #tpu.dot_dimension_numbers<[1], [0], [0], [1], [0, 0, 1, 1], [], []>} : vector<16x16xf32>, vector<16x32xf32>, vector<16x32xf32> -> vector<16x32xf32>
    %249 = vector.broadcast %245 : vector<1x32xf32> to vector<16x32xf32>
    %250 = arith.addf %249, %248 : vector<16x32xf32>
    %c3_162 = arith.constant 3 : index
    %c0_163 = arith.constant 0 : index
    %c0_164 = arith.constant 0 : index
    %251 = vector.load %arg9[%c3_162, %c0_163, %c0_164] : memref<4x16x32xf32, #tpu.memory_space<vmem>>, vector<1x16x32xf32>
    %252 = vector.shape_cast %251 : vector<1x16x32xf32> to vector<16x32xf32>
    %cst_165 = arith.constant dense<0.000000e+00> : vector<16x32xf32>
    %253 = tpu.matmul %243, %252, %cst_165 {dimension_numbers = #tpu.dot_dimension_numbers<[1], [0], [0], [1], [0, 0, 1, 1], [], []>} : vector<16x16xf32>, vector<16x32xf32>, vector<16x32xf32> -> vector<16x32xf32>
    %254 = arith.addf %250, %253 : vector<16x32xf32>
    %255 = arith.addf %165, %254 : vector<16x32xf32>
    %c1_166 = arith.constant 1 : index
    %c0_167 = arith.constant 0 : index
    %c0_168 = arith.constant 0 : index
    %256 = vector.load %arg15[%c1_166, %c0_167, %c0_168] : memref<2x1x32xf32, #tpu.memory_space<vmem>>, vector<1x1x32xf32>
    %257 = vector.shape_cast %256 : vector<1x1x32xf32> to vector<1x32xf32>
    %c1_169 = arith.constant 1 : index
    %c0_170 = arith.constant 0 : index
    %c0_171 = arith.constant 0 : index
    %258 = vector.load %arg16[%c1_169, %c0_170, %c0_171] : memref<2x1x32xf32, #tpu.memory_space<vmem>>, vector<1x1x32xf32>
    %259 = vector.shape_cast %258 : vector<1x1x32xf32> to vector<1x32xf32>
    %cst_172 = arith.constant dense<0.000000e+00> : vector<16xf32>
    %260 = vector.multi_reduction <add>, %255, %cst_172 [1] : vector<16x32xf32> to vector<16xf32>
    %261 = vector.shape_cast %260 : vector<16xf32> to vector<16x1xf32>
    %cst_173 = arith.constant 3.200000e+01 : f32
    %262 = vector.broadcast %cst_173 : f32 to vector<16x1xf32>
    %263 = arith.divf %261, %262 : vector<16x1xf32>
    %264 = vector.broadcast %263 : vector<16x1xf32> to vector<16x32xf32>
    %265 = arith.subf %255, %264 : vector<16x32xf32>
    %266 = arith.mulf %265, %265 : vector<16x32xf32>
    %cst_174 = arith.constant dense<0.000000e+00> : vector<16xf32>
    %267 = vector.multi_reduction <add>, %266, %cst_174 [1] : vector<16x32xf32> to vector<16xf32>
    %268 = vector.shape_cast %267 : vector<16xf32> to vector<16x1xf32>
    %cst_175 = arith.constant 3.200000e+01 : f32
    %269 = vector.broadcast %cst_175 : f32 to vector<16x1xf32>
    %270 = arith.divf %268, %269 : vector<16x1xf32>
    %271 = vector.broadcast %263 : vector<16x1xf32> to vector<16x32xf32>
    %272 = arith.subf %255, %271 : vector<16x32xf32>
    %cst_176 = arith.constant 9.99999974E-6 : f32
    %273 = vector.broadcast %cst_176 : f32 to vector<16x1xf32>
    %274 = arith.addf %270, %273 : vector<16x1xf32>
    %275 = math.rsqrt %274 : vector<16x1xf32>
    %276 = vector.broadcast %275 : vector<16x1xf32> to vector<16x32xf32>
    %277 = arith.mulf %272, %276 : vector<16x32xf32>
    %278 = vector.broadcast %257 : vector<1x32xf32> to vector<16x32xf32>
    %279 = arith.mulf %277, %278 : vector<16x32xf32>
    %280 = vector.broadcast %259 : vector<1x32xf32> to vector<16x32xf32>
    %281 = arith.addf %279, %280 : vector<16x32xf32>
    %c1_177 = arith.constant 1 : index
    %c0_178 = arith.constant 0 : index
    %c0_179 = arith.constant 0 : index
    %282 = vector.load %arg11[%c1_177, %c0_178, %c0_179] : memref<2x32x128xf32, #tpu.memory_space<vmem>>, vector<1x32x128xf32>
    %283 = vector.shape_cast %282 : vector<1x32x128xf32> to vector<32x128xf32>
    %cst_180 = arith.constant dense<0.000000e+00> : vector<16x128xf32>
    %284 = tpu.matmul %281, %283, %cst_180 {dimension_numbers = #tpu.dot_dimension_numbers<[1], [0], [0], [1], [0, 0, 1, 1], [], []>} : vector<16x32xf32>, vector<32x128xf32>, vector<16x128xf32> -> vector<16x128xf32>
    %c1_181 = arith.constant 1 : index
    %c0_182 = arith.constant 0 : index
    %c0_183 = arith.constant 0 : index
    %285 = vector.load %arg12[%c1_181, %c0_182, %c0_183] : memref<2x1x128xf32, #tpu.memory_space<vmem>>, vector<1x1x128xf32>
    %286 = vector.shape_cast %285 : vector<1x1x128xf32> to vector<1x128xf32>
    %287 = vector.broadcast %286 : vector<1x128xf32> to vector<16x128xf32>
    %288 = arith.addf %284, %287 : vector<16x128xf32>
    %cst_184 = arith.constant 0.000000e+00 : f32
    %289 = vector.broadcast %cst_184 : f32 to vector<16x128xf32>
    %290 = arith.maximumf %288, %289 : vector<16x128xf32>
    %c1_185 = arith.constant 1 : index
    %c0_186 = arith.constant 0 : index
    %c0_187 = arith.constant 0 : index
    %291 = vector.load %arg13[%c1_185, %c0_186, %c0_187] : memref<2x128x32xf32, #tpu.memory_space<vmem>>, vector<1x128x32xf32>
    %292 = vector.shape_cast %291 : vector<1x128x32xf32> to vector<128x32xf32>
    %cst_188 = arith.constant dense<0.000000e+00> : vector<16x32xf32>
    %293 = tpu.matmul %290, %292, %cst_188 {dimension_numbers = #tpu.dot_dimension_numbers<[1], [0], [0], [1], [0, 0, 1, 1], [], []>} : vector<16x128xf32>, vector<128x32xf32>, vector<16x32xf32> -> vector<16x32xf32>
    %c1_189 = arith.constant 1 : index
    %c0_190 = arith.constant 0 : index
    %c0_191 = arith.constant 0 : index
    %294 = vector.load %arg14[%c1_189, %c0_190, %c0_191] : memref<2x1x32xf32, #tpu.memory_space<vmem>>, vector<1x1x32xf32>
    %295 = vector.shape_cast %294 : vector<1x1x32xf32> to vector<1x32xf32>
    %296 = vector.broadcast %295 : vector<1x32xf32> to vector<16x32xf32>
    %297 = arith.addf %293, %296 : vector<16x32xf32>
    %298 = arith.addf %281, %297 : vector<16x32xf32>
    %c1_192 = arith.constant 1 : index
    %c0_193 = arith.constant 0 : index
    %c0_194 = arith.constant 0 : index
    %299 = vector.load %arg17[%c1_192, %c0_193, %c0_194] : memref<2x1x32xf32, #tpu.memory_space<vmem>>, vector<1x1x32xf32>
    %300 = vector.shape_cast %299 : vector<1x1x32xf32> to vector<1x32xf32>
    %c1_195 = arith.constant 1 : index
    %c0_196 = arith.constant 0 : index
    %c0_197 = arith.constant 0 : index
    %301 = vector.load %arg18[%c1_195, %c0_196, %c0_197] : memref<2x1x32xf32, #tpu.memory_space<vmem>>, vector<1x1x32xf32>
    %302 = vector.shape_cast %301 : vector<1x1x32xf32> to vector<1x32xf32>
    %cst_198 = arith.constant dense<0.000000e+00> : vector<16xf32>
    %303 = vector.multi_reduction <add>, %298, %cst_198 [1] : vector<16x32xf32> to vector<16xf32>
    %304 = vector.shape_cast %303 : vector<16xf32> to vector<16x1xf32>
    %cst_199 = arith.constant 3.200000e+01 : f32
    %305 = vector.broadcast %cst_199 : f32 to vector<16x1xf32>
    %306 = arith.divf %304, %305 : vector<16x1xf32>
    %307 = vector.broadcast %306 : vector<16x1xf32> to vector<16x32xf32>
    %308 = arith.subf %298, %307 : vector<16x32xf32>
    %309 = arith.mulf %308, %308 : vector<16x32xf32>
    %cst_200 = arith.constant dense<0.000000e+00> : vector<16xf32>
    %310 = vector.multi_reduction <add>, %309, %cst_200 [1] : vector<16x32xf32> to vector<16xf32>
    %311 = vector.shape_cast %310 : vector<16xf32> to vector<16x1xf32>
    %cst_201 = arith.constant 3.200000e+01 : f32
    %312 = vector.broadcast %cst_201 : f32 to vector<16x1xf32>
    %313 = arith.divf %311, %312 : vector<16x1xf32>
    %314 = vector.broadcast %306 : vector<16x1xf32> to vector<16x32xf32>
    %315 = arith.subf %298, %314 : vector<16x32xf32>
    %cst_202 = arith.constant 9.99999974E-6 : f32
    %316 = vector.broadcast %cst_202 : f32 to vector<16x1xf32>
    %317 = arith.addf %313, %316 : vector<16x1xf32>
    %318 = math.rsqrt %317 : vector<16x1xf32>
    %319 = vector.broadcast %318 : vector<16x1xf32> to vector<16x32xf32>
    %320 = arith.mulf %315, %319 : vector<16x32xf32>
    %321 = vector.broadcast %300 : vector<1x32xf32> to vector<16x32xf32>
    %322 = arith.mulf %320, %321 : vector<16x32xf32>
    %323 = vector.broadcast %302 : vector<1x32xf32> to vector<16x32xf32>
    %324 = arith.addf %322, %323 : vector<16x32xf32>
    %325 = vector.shape_cast %324 : vector<16x32xf32> to vector<2x8x32xf32>
    %cst_203 = arith.constant dense<0.000000e+00> : vector<2x32xf32>
    %326 = vector.multi_reduction <add>, %325, %cst_203 [1] : vector<2x8x32xf32> to vector<2x32xf32>
    %cst_204 = arith.constant 8.000000e+00 : f32
    %327 = vector.broadcast %cst_204 : f32 to vector<2x32xf32>
    %328 = arith.divf %326, %327 : vector<2x32xf32>
    %c0_205 = arith.constant 0 : index
    %c0_206 = arith.constant 0 : index
    %329 = vector.load %arg19[%c0_205, %c0_206] : memref<32x32xf32, #tpu.memory_space<vmem>>, vector<32x32xf32>
    %cst_207 = arith.constant dense<0.000000e+00> : vector<2x32xf32>
    %330 = tpu.matmul %328, %329, %cst_207 {dimension_numbers = #tpu.dot_dimension_numbers<[1], [0], [0], [1], [0, 0, 1, 1], [], []>} : vector<2x32xf32>, vector<32x32xf32>, vector<2x32xf32> -> vector<2x32xf32>
    %c0_208 = arith.constant 0 : index
    %c0_209 = arith.constant 0 : index
    %331 = vector.load %arg20[%c0_208, %c0_209] : memref<1x32xf32, #tpu.memory_space<vmem>>, vector<1x32xf32>
    %332 = vector.broadcast %331 : vector<1x32xf32> to vector<2x32xf32>
    %333 = arith.addf %330, %332 : vector<2x32xf32>
    %c0_210 = arith.constant 0 : index
    %c0_211 = arith.constant 0 : index
    %334 = vector.load %arg21[%c0_210, %c0_211] : memref<1x32xf32, #tpu.memory_space<vmem>>, vector<1x32xf32>
    %c0_212 = arith.constant 0 : index
    %c0_213 = arith.constant 0 : index
    %335 = vector.load %arg22[%c0_212, %c0_213] : memref<1x32xf32, #tpu.memory_space<vmem>>, vector<1x32xf32>
    %cst_214 = arith.constant dense<0.000000e+00> : vector<2xf32>
    %336 = vector.multi_reduction <add>, %333, %cst_214 [1] : vector<2x32xf32> to vector<2xf32>
    %337 = vector.shape_cast %336 : vector<2xf32> to vector<2x1xf32>
    %cst_215 = arith.constant 3.200000e+01 : f32
    %338 = vector.broadcast %cst_215 : f32 to vector<2x1xf32>
    %339 = arith.divf %337, %338 : vector<2x1xf32>
    %340 = vector.broadcast %339 : vector<2x1xf32> to vector<2x32xf32>
    %341 = arith.subf %333, %340 : vector<2x32xf32>
    %342 = arith.mulf %341, %341 : vector<2x32xf32>
    %cst_216 = arith.constant dense<0.000000e+00> : vector<2xf32>
    %343 = vector.multi_reduction <add>, %342, %cst_216 [1] : vector<2x32xf32> to vector<2xf32>
    %344 = vector.shape_cast %343 : vector<2xf32> to vector<2x1xf32>
    %cst_217 = arith.constant 3.200000e+01 : f32
    %345 = vector.broadcast %cst_217 : f32 to vector<2x1xf32>
    %346 = arith.divf %344, %345 : vector<2x1xf32>
    %347 = vector.broadcast %339 : vector<2x1xf32> to vector<2x32xf32>
    %348 = arith.subf %333, %347 : vector<2x32xf32>
    %cst_218 = arith.constant 9.99999974E-6 : f32
    %349 = vector.broadcast %cst_218 : f32 to vector<2x1xf32>
    %350 = arith.addf %346, %349 : vector<2x1xf32>
    %351 = math.rsqrt %350 : vector<2x1xf32>
    %352 = vector.broadcast %351 : vector<2x1xf32> to vector<2x32xf32>
    %353 = arith.mulf %348, %352 : vector<2x32xf32>
    %354 = vector.broadcast %334 : vector<1x32xf32> to vector<2x32xf32>
    %355 = arith.mulf %353, %354 : vector<2x32xf32>
    %356 = vector.broadcast %335 : vector<1x32xf32> to vector<2x32xf32>
    %357 = arith.addf %355, %356 : vector<2x32xf32>
    %c0_219 = arith.constant 0 : index
    %c0_220 = arith.constant 0 : index
    %358 = vector.load %arg23[%c0_219, %c0_220] : memref<2x32xf32, #tpu.memory_space<vmem>>, vector<2x32xf32>
    tpu.vector_store %arg23[%c0_219, %c0_220], %357 {strides = array<i32>} : memref<2x32xf32, #tpu.memory_space<vmem>>, vector<2x32xf32>,
    return
  }
}

</mosaic_0001>

<llo_original>
// kernel: tpu_custom_call.1
$region0: #{tpu_custom_call.1}
  #allocation0 [shape = 'u32[]', space=smem, size = 0x4, offset = 0x4, fixed_abs, tag = 'smem constant byte address 0x4 - core index']
  #allocation1 [shape = 'u32[72,128]{1,0:T(1,128)}', space=vmem, size = 0x9000, scoped, tag = 'internal scratch']
  %s0 = inlined_call_operand.vmem [shape: f32[2,8,6], index: 0, kind: input, shape index: {}]
  %s1 = inlined_call_operand.vmem [shape: f32[6,32], index: 1, kind: input, shape index: {}]
  %s2 = inlined_call_operand.vmem [shape: f32[1,32], index: 2, kind: input, shape index: {}]
  %s3 = inlined_call_operand.vmem [shape: f32[4,32,16], index: 3, kind: input, shape index: {}]
  %s4 = inlined_call_operand.vmem [shape: f32[4,1,16], index: 4, kind: input, shape index: {}]
  %s5 = inlined_call_operand.vmem [shape: f32[4,32,16], index: 5, kind: input, shape index: {}]
  %s6 = inlined_call_operand.vmem [shape: f32[4,1,16], index: 6, kind: input, shape index: {}]
  %s7 = inlined_call_operand.vmem [shape: f32[4,32,16], index: 7, kind: input, shape index: {}]
  %s8 = inlined_call_operand.vmem [shape: f32[4,1,16], index: 8, kind: input, shape index: {}]
  %s9 = inlined_call_operand.vmem [shape: f32[4,16,32], index: 9, kind: input, shape index: {}]
  %s10 = inlined_call_operand.vmem [shape: f32[2,1,32], index: 10, kind: input, shape index: {}]
  %s11 = inlined_call_operand.vmem [shape: f32[2,32,128], index: 11, kind: input, shape index: {}]
  %s12 = inlined_call_operand.vmem [shape: f32[2,1,128], index: 12, kind: input, shape index: {}]
  %s13 = inlined_call_operand.vmem [shape: f32[2,128,32], index: 13, kind: input, shape index: {}]
  %s14 = inlined_call_operand.vmem [shape: f32[2,1,32], index: 14, kind: input, shape index: {}]
  %s15 = inlined_call_operand.vmem [shape: f32[2,1,32], index: 15, kind: input, shape index: {}]
  %s16 = inlined_call_operand.vmem [shape: f32[2,1,32], index: 16, kind: input, shape index: {}]
  %s17 = inlined_call_operand.vmem [shape: f32[2,1,32], index: 17, kind: input, shape index: {}]
  %s18 = inlined_call_operand.vmem [shape: f32[2,1,32], index: 18, kind: input, shape index: {}]
  %s19 = inlined_call_operand.vmem [shape: f32[32,32], index: 19, kind: input, shape index: {}]
  %s20 = inlined_call_operand.vmem [shape: f32[1,32], index: 20, kind: input, shape index: {}]
  %s21 = inlined_call_operand.vmem [shape: f32[1,32], index: 21, kind: input, shape index: {}]
  %s22 = inlined_call_operand.vmem [shape: f32[1,32], index: 22, kind: input, shape index: {}]
  %s23 = inlined_call_operand.hbm [shape: f32[2,32], index: 23, kind: output, shape index: {}]
  %s24 = sld [smem:[#allocation0]]
  $region102: #{tpu_custom_call.1} parent=0
    _
  %s26 = ssub.s32 1, %s24
  %s27 = scalar_select 0, %s26, %s24
  $region1: #{tpu_custom_call.1} parent=0
    #allocation2 [shape = 'u8[1024]{0}', space=vmem, size = 0x400, scoped, tag = 'output window, operand 0, single buffered']
    #allocation3 [shape = 's32[1]{0}', space=sflag, size = 0x4, scoped, tag = 'scoped memory for tpu_custom_call.1']
    %28 = vsyncpa [#allocation3], 0
    // Predicated region
    $region2: #{tpu_custom_call.1} parent=1 // pred_check
      _
    $region3: #{tpu_custom_call.1} parent=1 // pred_check_branch
      %30 = sbr.rel (0) target = $region5
    $region4: #{tpu_custom_call.1} parent=1 // pred_region
      _
    $region5: #{tpu_custom_call.1} parent=1 // pred_fallthru
      _
    // Predicated region
    $region6: #{tpu_custom_call.1} parent=1 // pred_check
      _
    $region7: #{tpu_custom_call.1} parent=1 // pred_check_branch
      %32 = sbr.rel (0) target = $region9
    $region8: #{tpu_custom_call.1} parent=1 // pred_region
      _
    $region9: #{tpu_custom_call.1} parent=1 // pred_fallthru
      _
    // Predicated region
    $region10: #{tpu_custom_call.1} parent=1 // pred_check
      _
    $region11: #{tpu_custom_call.1} parent=1 // pred_check_branch
      %34 = sbr.rel (0) target = $region13
    $region12: #{tpu_custom_call.1} parent=1 // pred_region
      _
    $region13: #{tpu_custom_call.1} parent=1 // pred_fallthru
      _
    // Predicated region
    $region14: #{tpu_custom_call.1} parent=1 // pred_check
      _
    $region15: #{tpu_custom_call.1} parent=1 // pred_check_branch
      %36 = sbr.rel (0) target = $region17
    $region16: #{tpu_custom_call.1} parent=1 // pred_region
      _
    $region17: #{tpu_custom_call.1} parent=1 // pred_fallthru
      _
    // Predicated region
    $region18: #{tpu_custom_call.1} parent=1 // pred_check
      _
    $region19: #{tpu_custom_call.1} parent=1 // pred_check_branch
      %38 = sbr.rel (0) target = $region21
    $region20: #{tpu_custom_call.1} parent=1 // pred_region
      _
    $region21: #{tpu_custom_call.1} parent=1 // pred_fallthru
      _
    // Predicated region
    $region22: #{tpu_custom_call.1} parent=1 // pred_check
      _
    $region23: #{tpu_custom_call.1} parent=1 // pred_check_branch
      %40 = sbr.rel (0) target = $region25
    $region24: #{tpu_custom_call.1} parent=1 // pred_region
      _
    $region25: #{tpu_custom_call.1} parent=1 // pred_fallthru
      _
    // Predicated region
    $region26: #{tpu_custom_call.1} parent=1 // pred_check
      _
    $region27: #{tpu_custom_call.1} parent=1 // pred_check_branch
      %42 = sbr.rel (0) target = $region29
    $region28: #{tpu_custom_call.1} parent=1 // pred_region
      _
    $region29: #{tpu_custom_call.1} parent=1 // pred_fallthru
      _
    // Predicated region
    $region30: #{tpu_custom_call.1} parent=1 // pred_check
      _
    $region31: #{tpu_custom_call.1} parent=1 // pred_check_branch
      %44 = sbr.rel (0) target = $region33
    $region32: #{tpu_custom_call.1} parent=1 // pred_region
      _
    $region33: #{tpu_custom_call.1} parent=1 // pred_fallthru
      _
    // Predicated region
    $region34: #{tpu_custom_call.1} parent=1 // pred_check
      _
    $region35: #{tpu_custom_call.1} parent=1 // pred_check_branch
      %46 = sbr.rel (0) target = $region37
    $region36: #{tpu_custom_call.1} parent=1 // pred_region
      _
    $region37: #{tpu_custom_call.1} parent=1 // pred_fallthru
      _
    // Predicated region
    $region38: #{tpu_custom_call.1} parent=1 // pred_check
      _
    $region39: #{tpu_custom_call.1} parent=1 // pred_check_branch
      %48 = sbr.rel (0) target = $region41
    $region40: #{tpu_custom_call.1} parent=1 // pred_region
      _
    $region41: #{tpu_custom_call.1} parent=1 // pred_fallthru
      _
    // Predicated region
    $region42: #{tpu_custom_call.1} parent=1 // pred_check
      _
    $region43: #{tpu_custom_call.1} parent=1 // pred_check_branch
      %50 = sbr.rel (0) target = $region45
    $region44: #{tpu_custom_call.1} parent=1 // pred_region
      _
    $region45: #{tpu_custom_call.1} parent=1 // pred_fallthru
      _
    // Predicated region
    $region46: #{tpu_custom_call.1} parent=1 // pred_check
      _
    $region47: #{tpu_custom_call.1} parent=1 // pred_check_branch
      %52 = sbr.rel (0) target = $region49
    $region48: #{tpu_custom_call.1} parent=1 // pred_region
      _
    $region49: #{tpu_custom_call.1} parent=1 // pred_fallthru
      _
    // Predicated region
    $region50: #{tpu_custom_call.1} parent=1 // pred_check
      _
    $region51: #{tpu_custom_call.1} parent=1 // pred_check_branch
      %54 = sbr.rel (0) target = $region53
    $region52: #{tpu_custom_call.1} parent=1 // pred_region
      _
    $region53: #{tpu_custom_call.1} parent=1 // pred_fallthru
      _
    // Predicated region
    $region54: #{tpu_custom_call.1} parent=1 // pred_check
      _
    $region55: #{tpu_custom_call.1} parent=1 // pred_check_branch
      %56 = sbr.rel (0) target = $region57
    $region56: #{tpu_custom_call.1} parent=1 // pred_region
      _
    $region57: #{tpu_custom_call.1} parent=1 // pred_fallthru
      _
    // Predicated region
    $region58: #{tpu_custom_call.1} parent=1 // pred_check
      _
    $region59: #{tpu_custom_call.1} parent=1 // pred_check_branch
      %58 = sbr.rel (0) target = $region61
    $region60: #{tpu_custom_call.1} parent=1 // pred_region
      _
    $region61: #{tpu_custom_call.1} parent=1 // pred_fallthru
      _
    // Predicated region
    $region62: #{tpu_custom_call.1} parent=1 // pred_check
      _
    $region63: #{tpu_custom_call.1} parent=1 // pred_check_branch
      %60 = sbr.rel (0) target = $region65
    $region64: #{tpu_custom_call.1} parent=1 // pred_region
      _
    $region65: #{tpu_custom_call.1} parent=1 // pred_fallthru
      _
    // Predicated region
    $region66: #{tpu_custom_call.1} parent=1 // pred_check
      _
    $region67: #{tpu_custom_call.1} parent=1 // pred_check_branch
      %62 = sbr.rel (0) target = $region69
    $region68: #{tpu_custom_call.1} parent=1 // pred_region
      _
    $region69: #{tpu_custom_call.1} parent=1 // pred_fallthru
      _
    // Predicated region
    $region70: #{tpu_custom_call.1} parent=1 // pred_check
      _
    $region71: #{tpu_custom_call.1} parent=1 // pred_check_branch
      %64 = sbr.rel (0) target = $region73
    $region72: #{tpu_custom_call.1} parent=1 // pred_region
      _
    $region73: #{tpu_custom_call.1} parent=1 // pred_fallthru
      _
    // Predicated region
    $region74: #{tpu_custom_call.1} parent=1 // pred_check
      _
    $region75: #{tpu_custom_call.1} parent=1 // pred_check_branch
      %66 = sbr.rel (0) target = $region77
    $region76: #{tpu_custom_call.1} parent=1 // pred_region
      _
    $region77: #{tpu_custom_call.1} parent=1 // pred_fallthru
      _
    // Predicated region
    $region78: #{tpu_custom_call.1} parent=1 // pred_check
      _
    $region79: #{tpu_custom_call.1} parent=1 // pred_check_branch
      %68 = sbr.rel (0) target = $region81
    $region80: #{tpu_custom_call.1} parent=1 // pred_region
      _
    $region81: #{tpu_custom_call.1} parent=1 // pred_fallthru
      _
    // Predicated region
    $region82: #{tpu_custom_call.1} parent=1 // pred_check
      _
    $region83: #{tpu_custom_call.1} parent=1 // pred_check_branch
      %70 = sbr.rel (0) target = $region85
    $region84: #{tpu_custom_call.1} parent=1 // pred_region
      _
    $region85: #{tpu_custom_call.1} parent=1 // pred_fallthru
      _
    // Predicated region
    $region86: #{tpu_custom_call.1} parent=1 // pred_check
      _
    $region87: #{tpu_custom_call.1} parent=1 // pred_check_branch
      %72 = sbr.rel (0) target = $region89
    $region88: #{tpu_custom_call.1} parent=1 // pred_region
      _
    $region89: #{tpu_custom_call.1} parent=1 // pred_fallthru
      _
    // Predicated region
    $region90: #{tpu_custom_call.1} parent=1 // pred_check
      _
    $region91: #{tpu_custom_call.1} parent=1 // pred_check_branch
      %74 = sbr.rel (0) target = $region93
    $region92: #{tpu_custom_call.1} parent=1 // pred_region
      _
    $region93: #{tpu_custom_call.1} parent=1 // pred_fallthru
      _
    %v75 = vld [vmem:[%s0] sm:$0xff]
    %v76 = vld [vmem:[%s0 + $0x8] sm:$0xff]
    %v77 = vld [vmem:[%s1] sm:$0x3f]
    %v78 = vld [vmem:[%s2] sm:$0x1]
    %v80 = vperm.slane %v78, 0
    %vm82 = vcmask 48128
    %v84 = vsel %vm82, %v75, 0
    %v87 = vsel %vm82, %v76, 0
    %vm89 = vcmask 1045504
    %v91 = vsel %vm89, %v77, 0
    %93 = vmatpush.msra.mxu0 0.0
    %94 = vmatpush.msra.mxu0 0.0
    %95 = vmatpush.msra.mxu0 0.0
    %96 = vmatpush.msra.mxu0 0.0
    %97 = vmatpush.msra.mxu0 0.0
    %98 = vmatpush.msra.mxu0 0.0
    %99 = vmatpush.msra.mxu0 0.0
    %100 = vmatpush.msra.mxu0 0.0
    %101 = vmatpush.msra.mxu0 0.0
    %102 = vmatpush.msra.mxu0 0.0
    %103 = vmatpush.msra.mxu0 0.0
    %104 = vmatpush.msra.mxu0 0.0
    %105 = vmatpush.msra.mxu0 0.0
    %106 = vmatpush.msra.mxu0 0.0
    %107 = vmatpush.msra.mxu0 0.0
    %108 = vmatpush.msra.mxu0 %v91
    %109 = vmatmul.f32.gmra.mxu0 %v84
    %v110 = vpop.f32.mrf.mxu0
    %v111 = vadd.f32 %v80, %v110
    %112 = vmatmul.f32.gmra.mxu0 %v87
    %v113 = vpop.f32.mrf.mxu0
    %v114 = vadd.f32 %v80, %v113
    %115 = vdwg.mxu0
    %v116 = vld [vmem:[%s3] sm:$0xff]
    %v117 = vld [vmem:[%s3 + $0x8] sm:$0xff]
    %v118 = vld [vmem:[%s3 + $0x10] sm:$0xff]
    %v119 = vld [vmem:[%s3 + $0x18] sm:$0xff]
    %v120 = vld [vmem:[%s4] sm:$0x1]
    %v122 = vperm.slane %v120, 0
    %vm124 = vcmask 261120
    %v126 = vsel %vm124, %v111, 0
    %v129 = vsel %vm124, %v114, 0
    %131 = vmatpush.msra.mxu0 0.0
    %132 = vmatpush.msra.mxu0 0.0
    %133 = vmatpush.msra.mxu0 0.0
    %134 = vmatpush.msra.mxu0 0.0
    %135 = vmatpush.msra.mxu0 0.0
    %136 = vmatpush.msra.mxu0 0.0
    %137 = vmatpush.msra.mxu0 0.0
    %138 = vmatpush.msra.mxu0 0.0
    %139 = vmatpush.msra.mxu0 0.0
    %140 = vmatpush.msra.mxu0 0.0
    %141 = vmatpush.msra.mxu0 0.0
    %142 = vmatpush.msra.mxu0 0.0
    %143 = vmatpush.msra.mxu0 %v119
    %144 = vmatpush.msra.mxu0 %v118
    %145 = vmatpush.msra.mxu0 %v117
    %146 = vmatpush.msra.mxu0 %v116
    %147 = vmatmul.f32.gmra.mxu0 %v126
    %v148 = vpop.f32.mrf.mxu0
    %v149 = vadd.f32 %v122, %v148
    %150 = vmatmul.f32.gmra.mxu0 %v129
    %v151 = vpop.f32.mrf.mxu0
    %v152 = vadd.f32 %v122, %v151
    %153 = vdwg.mxu0
    %v154 = vld [vmem:[%s5] sm:$0xff]
    %v155 = vld [vmem:[%s5 + $0x8] sm:$0xff]
    %v156 = vld [vmem:[%s5 + $0x10] sm:$0xff]
    %v157 = vld [vmem:[%s5 + $0x18] sm:$0xff]
    %v158 = vld [vmem:[%s6] sm:$0x1]
    %v160 = vperm.slane %v158, 0
    %162 = vmatpush.msra.mxu0 0.0
    %163 = vmatpush.msra.mxu0 0.0
    %164 = vmatpush.msra.mxu0 0.0
    %165 = vmatpush.msra.mxu0 0.0
    %166 = vmatpush.msra.mxu0 0.0
    %167 = vmatpush.msra.mxu0 0.0
    %168 = vmatpush.msra.mxu0 0.0
    %169 = vmatpush.msra.mxu0 0.0
    %170 = vmatpush.msra.mxu0 0.0
    %171 = vmatpush.msra.mxu0 0.0
    %172 = vmatpush.msra.mxu0 0.0
    %173 = vmatpush.msra.mxu0 0.0
    %174 = vmatpush.msra.mxu0 %v157
    %175 = vmatpush.msra.mxu0 %v156
    %176 = vmatpush.msra.mxu0 %v155
    %177 = vmatpush.msra.mxu0 %v154
    %178 = vmatmul.f32.gmra.mxu0 %v126
    %v179 = vpop.f32.mrf.mxu0
    %v180 = vadd.f32 %v160, %v179
    %181 = vmatmul.f32.gmra.mxu0 %v129
    %v182 = vpop.f32.mrf.mxu0
    %v183 = vadd.f32 %v160, %v182
    %184 = vdwg.mxu0
    %v185 = vld [vmem:[%s7] sm:$0xff]
    %v186 = vld [vmem:[%s7 + $0x8] sm:$0xff]
    %v187 = vld [vmem:[%s7 + $0x10] sm:$0xff]
    %v188 = vld [vmem:[%s7 + $0x18] sm:$0xff]
    %v189 = vld [vmem:[%s8] sm:$0x1]
    %v191 = vperm.slane %v189, 0
    %193 = vmatpush.msra.mxu0 0.0
    %194 = vmatpush.msra.mxu0 0.0
    %195 = vmatpush.msra.mxu0 0.0
    %196 = vmatpush.msra.mxu0 0.0
    %197 = vmatpush.msra.mxu0 0.0
    %198 = vmatpush.msra.mxu0 0.0
    %199 = vmatpush.msra.mxu0 0.0
    %200 = vmatpush.msra.mxu0 0.0
    %201 = vmatpush.msra.mxu0 0.0
    %202 = vmatpush.msra.mxu0 0.0
    %203 = vmatpush.msra.mxu0 0.0
    %204 = vmatpush.msra.mxu0 0.0
    %205 = vmatpush.msra.mxu0 %v188
    %206 = vmatpush.msra.mxu0 %v187
    %207 = vmatpush.msra.mxu0 %v186
    %208 = vmatpush.msra.mxu0 %v185
    %209 = vmatmul.f32.gmra.mxu0 %v126
    %v210 = vpop.f32.mrf.mxu0
    %v211 = vadd.f32 %v191, %v210
    %212 = vmatmul.f32.gmra.mxu0 %v129
    %v213 = vpop.f32.mrf.mxu0
    %v214 = vadd.f32 %v191, %v213
    %215 = vdwg.mxu0
    %vm216 = vcmask 130048
    %v218 = vsel %vm216, %v149, 0
    %v221 = vsel %vm216, %v180, 0
    %223 = vmatpush.xpose.msra.mxu0 0.0
    %224 = vmatpush.xpose.msra.mxu0 0.0
    %225 = vmatpush.xpose.msra.mxu0 0.0
    %226 = vmatpush.xpose.msra.mxu0 0.0
    %227 = vmatpush.xpose.msra.mxu0 0.0
    %228 = vmatpush.xpose.msra.mxu0 0.0
    %229 = vmatpush.xpose.msra.mxu0 0.0
    %230 = vmatpush.xpose.msra.mxu0 0.0
    %231 = vmatpush.xpose.msra.mxu0 0.0
    %232 = vmatpush.xpose.msra.mxu0 0.0
    %233 = vmatpush.xpose.msra.mxu0 0.0
    %234 = vmatpush.xpose.msra.mxu0 0.0
    %235 = vmatpush.xpose.msra.mxu0 0.0
    %236 = vmatpush.xpose.msra.mxu0 0.0
    %237 = vmatpush.xpose.msra.mxu0 0.0
    %238 = vmatpush.xpose.msra.mxu0 %v221
    %239 = vmatmul.f32.gmra.mxu0 %v218
    %v240 = vpop.f32.mrf.mxu0
    %v241 = vadd.f32 0.0, %v240
    %242 = vdwg.mxu0
    %v244 = vsel %vm216, %v152, 0
    %v247 = vsel %vm216, %v183, 0
    %249 = vmatpush.xpose.msra.mxu0 0.0
    %250 = vmatpush.xpose.msra.mxu0 0.0
    %251 = vmatpush.xpose.msra.mxu0 0.0
    %252 = vmatpush.xpose.msra.mxu0 0.0
    %253 = vmatpush.xpose.msra.mxu0 0.0
    %254 = vmatpush.xpose.msra.mxu0 0.0
    %255 = vmatpush.xpose.msra.mxu0 0.0
    %256 = vmatpush.xpose.msra.mxu0 0.0
    %257 = vmatpush.xpose.msra.mxu0 0.0
    %258 = vmatpush.xpose.msra.mxu0 0.0
    %259 = vmatpush.xpose.msra.mxu0 0.0
    %260 = vmatpush.xpose.msra.mxu0 0.0
    %261 = vmatpush.xpose.msra.mxu0 0.0
    %262 = vmatpush.xpose.msra.mxu0 0.0
    %263 = vmatpush.xpose.msra.mxu0 0.0
    %264 = vmatpush.xpose.msra.mxu0 %v247
    %265 = vmatmul.f32.gmra.mxu0 %v244
    %v266 = vpop.f32.mrf.mxu0
    %v267 = vadd.f32 0.0, %v266
    %268 = vdwg.mxu0
    %v269 = vmul.f32 %v241, 0.25
    %v270 = vmul.f32 %v267, 0.25
    %vm271 = vcmask 64512
    %v272 = vsel %vm271, %v269, -inf
    %273 = vmax.xlane.f32.xlu0 %v272
    %v274 = vpop.xlane.xlu0 %273
    %v275 = vsel %vm271, %v270, -inf
    %276 = vmax.xlane.f32.xlu0 %v275
    %v277 = vpop.xlane.xlu0 %276
    %v278 = vsub.f32 %v269, %v274
    %v279 = vsub.f32 %v270, %v277
    %v280 = vmul.f32 %v278, 1.442695
    %v281 = vpow.pop %v280
    %v282 = vmul.f32 %v279, 1.442695
    %v283 = vpow.pop %v282
    %v284 = vsel %vm271, %v281, 0.0
    %285 = vadd.xlane.f32.xlu0 %v284
    %v286 = vpop.xlane.xlu0 %285
    %v287 = vsel %vm271, %v283, 0.0
    %288 = vadd.xlane.f32.xlu0 %v287
    %v289 = vpop.xlane.xlu0 %288
    %v290 = vrcp.pop %v286
    %v291 = vrcp.pop %v289
    %v292 = vmul.f32 %v281, %v290
    %v293 = vmul.f32 %v283, %v291
    %v295 = vsel %vm271, %v292, 0
    %297 = vmatpush.msra.mxu0 0.0
    %298 = vmatpush.msra.mxu0 0.0
    %299 = vmatpush.msra.mxu0 0.0
    %300 = vmatpush.msra.mxu0 0.0
    %301 = vmatpush.msra.mxu0 0.0
    %302 = vmatpush.msra.mxu0 0.0
    %303 = vmatpush.msra.mxu0 0.0
    %304 = vmatpush.msra.mxu0 0.0
    %305 = vmatpush.msra.mxu0 0.0
    %306 = vmatpush.msra.mxu0 0.0
    %307 = vmatpush.msra.mxu0 0.0
    %308 = vmatpush.msra.mxu0 0.0
    %309 = vmatpush.msra.mxu0 0.0
    %310 = vmatpush.msra.mxu0 0.0
    %311 = vmatpush.msra.mxu0 0.0
    %312 = vmatpush.msra.mxu0 %v211
    %313 = vmatmul.f32.gmra.mxu0 %v295
    %v314 = vpop.f32.mrf.mxu0
    %v315 = vadd.f32 0.0, %v314
    %316 = vdwg.mxu0
    %v318 = vsel %vm271, %v293, 0
    %320 = vmatpush.msra.mxu0 0.0
    %321 = vmatpush.msra.mxu0 0.0
    %322 = vmatpush.msra.mxu0 0.0
    %323 = vmatpush.msra.mxu0 0.0
    %324 = vmatpush.msra.mxu0 0.0
    %325 = vmatpush.msra.mxu0 0.0
    %326 = vmatpush.msra.mxu0 0.0
    %327 = vmatpush.msra.mxu0 0.0
    %328 = vmatpush.msra.mxu0 0.0
    %329 = vmatpush.msra.mxu0 0.0
    %330 = vmatpush.msra.mxu0 0.0
    %331 = vmatpush.msra.mxu0 0.0
    %332 = vmatpush.msra.mxu0 0.0
    %333 = vmatpush.msra.mxu0 0.0
    %334 = vmatpush.msra.mxu0 0.0
    %335 = vmatpush.msra.mxu0 %v214
    %336 = vmatmul.f32.gmra.mxu0 %v318
    %v337 = vpop.f32.mrf.mxu0
    %v338 = vadd.f32 0.0, %v337
    %339 = vdwg.mxu0
    %s340 = scalar_lea.vmem %s3, 32
    %v341 = vld [vmem:[%s340] sm:$0xff]
    %v342 = vld [vmem:[%s340 + $0x8] sm:$0xff]
    %v343 = vld [vmem:[%s340 + $0x10] sm:$0xff]
    %v344 = vld [vmem:[%s340 + $0x18] sm:$0xff]
    %s345 = scalar_lea.vmem %s4, 1
    %v346 = vld [vmem:[%s345] sm:$0x1]
    %v348 = vperm.slane %v346, 0
    %350 = vmatpush.msra.mxu0 0.0
    %351 = vmatpush.msra.mxu0 0.0
    %352 = vmatpush.msra.mxu0 0.0
    %353 = vmatpush.msra.mxu0 0.0
    %354 = vmatpush.msra.mxu0 0.0
    %355 = vmatpush.msra.mxu0 0.0
    %356 = vmatpush.msra.mxu0 0.0
    %357 = vmatpush.msra.mxu0 0.0
    %358 = vmatpush.msra.mxu0 0.0
    %359 = vmatpush.msra.mxu0 0.0
    %360 = vmatpush.msra.mxu0 0.0
    %361 = vmatpush.msra.mxu0 0.0
    %362 = vmatpush.msra.mxu0 %v344
    %363 = vmatpush.msra.mxu0 %v343
    %364 = vmatpush.msra.mxu0 %v342
    %365 = vmatpush.msra.mxu0 %v341
    %366 = vmatmul.f32.gmra.mxu0 %v126
    %v367 = vpop.f32.mrf.mxu0
    %v368 = vadd.f32 %v348, %v367
    %369 = vmatmul.f32.gmra.mxu0 %v129
    %v370 = vpop.f32.mrf.mxu0
    %v371 = vadd.f32 %v348, %v370
    %372 = vdwg.mxu0
    %s373 = scalar_lea.vmem %s5, 32
    %v374 = vld [vmem:[%s373] sm:$0xff]
    %v375 = vld [vmem:[%s373 + $0x8] sm:$0xff]
    %v376 = vld [vmem:[%s373 + $0x10] sm:$0xff]
    %v377 = vld [vmem:[%s373 + $0x18] sm:$0xff]
    %s378 = scalar_lea.vmem %s6, 1
    %v379 = vld [vmem:[%s378] sm:$0x1]
    %v381 = vperm.slane %v379, 0
    %383 = vmatpush.msra.mxu0 0.0
    %384 = vmatpush.msra.mxu0 0.0
    %385 = vmatpush.msra.mxu0 0.0
    %386 = vmatpush.msra.mxu0 0.0
    %387 = vmatpush.msra.mxu0 0.0
    %388 = vmatpush.msra.mxu0 0.0
    %389 = vmatpush.msra.mxu0 0.0
    %390 = vmatpush.msra.mxu0 0.0
    %391 = vmatpush.msra.mxu0 0.0
    %392 = vmatpush.msra.mxu0 0.0
    %393 = vmatpush.msra.mxu0 0.0
    %394 = vmatpush.msra.mxu0 0.0
    %395 = vmatpush.msra.mxu0 %v377
    %396 = vmatpush.msra.mxu0 %v376
    %397 = vmatpush.msra.mxu0 %v375
    %398 = vmatpush.msra.mxu0 %v374
    %399 = vmatmul.f32.gmra.mxu0 %v126
    %v400 = vpop.f32.mrf.mxu0
    %v401 = vadd.f32 %v381, %v400
    %402 = vmatmul.f32.gmra.mxu0 %v129
    %v403 = vpop.f32.mrf.mxu0
    %v404 = vadd.f32 %v381, %v403
    %405 = vdwg.mxu0
    %s406 = scalar_lea.vmem %s7, 32
    %v407 = vld [vmem:[%s406] sm:$0xff]
    %v408 = vld [vmem:[%s406 + $0x8] sm:$0xff]
    %v409 = vld [vmem:[%s406 + $0x10] sm:$0xff]
    %v410 = vld [vmem:[%s406 + $0x18] sm:$0xff]
    %s411 = scalar_lea.vmem %s8, 1
    %v412 = vld [vmem:[%s411] sm:$0x1]
    %v414 = vperm.slane %v412, 0
    %416 = vmatpush.msra.mxu0 0.0
    %417 = vmatpush.msra.mxu0 0.0
    %418 = vmatpush.msra.mxu0 0.0
    %419 = vmatpush.msra.mxu0 0.0
    %420 = vmatpush.msra.mxu0 0.0
    %421 = vmatpush.msra.mxu0 0.0
    %422 = vmatpush.msra.mxu0 0.0
    %423 = vmatpush.msra.mxu0 0.0
    %424 = vmatpush.msra.mxu0 0.0
    %425 = vmatpush.msra.mxu0 0.0
    %426 = vmatpush.msra.mxu0 0.0
    %427 = vmatpush.msra.mxu0 0.0
    %428 = vmatpush.msra.mxu0 %v410
    %429 = vmatpush.msra.mxu0 %v409
    %430 = vmatpush.msra.mxu0 %v408
    %431 = vmatpush.msra.mxu0 %v407
    %432 = vmatmul.f32.gmra.mxu0 %v126
    %v433 = vpop.f32.mrf.mxu0
    %v434 = vadd.f32 %v414, %v433
    %435 = vmatmul.f32.gmra.mxu0 %v129
    %v436 = vpop.f32.mrf.mxu0
    %v437 = vadd.f32 %v414, %v436
    %438 = vdwg.mxu0
    %v440 = vsel %vm216, %v368, 0
    %v443 = vsel %vm216, %v401, 0
    %445 = vmatpush.xpose.msra.mxu0 0.0
    %446 = vmatpush.xpose.msra.mxu0 0.0
    %447 = vmatpush.xpose.msra.mxu0 0.0
    %448 = vmatpush.xpose.msra.mxu0 0.0
    %449 = vmatpush.xpose.msra.mxu0 0.0
    %450 = vmatpush.xpose.msra.mxu0 0.0
    %451 = vmatpush.xpose.msra.mxu0 0.0
    %452 = vmatpush.xpose.msra.mxu0 0.0
    %453 = vmatpush.xpose.msra.mxu0 0.0
    %454 = vmatpush.xpose.msra.mxu0 0.0
    %455 = vmatpush.xpose.msra.mxu0 0.0
    %456 = vmatpush.xpose.msra.mxu0 0.0
    %457 = vmatpush.xpose.msra.mxu0 0.0
    %458 = vmatpush.xpose.msra.mxu0 0.0
    %459 = vmatpush.xpose.msra.mxu0 0.0
    %460 = vmatpush.xpose.msra.mxu0 %v443
    %461 = vmatmul.f32.gmra.mxu0 %v440
    %v462 = vpop.f32.mrf.mxu0
    %v463 = vadd.f32 0.0, %v462
    %464 = vdwg.mxu0
    %v466 = vsel %vm216, %v371, 0
    %v469 = vsel %vm216, %v404, 0
    %471 = vmatpush.xpose.msra.mxu0 0.0
    %472 = vmatpush.xpose.msra.mxu0 0.0
    %473 = vmatpush.xpose.msra.mxu0 0.0
    %474 = vmatpush.xpose.msra.mxu0 0.0
    %475 = vmatpush.xpose.msra.mxu0 0.0
    %476 = vmatpush.xpose.msra.mxu0 0.0
    %477 = vmatpush.xpose.msra.mxu0 0.0
    %478 = vmatpush.xpose.msra.mxu0 0.0
    %479 = vmatpush.xpose.msra.mxu0 0.0
    %480 = vmatpush.xpose.msra.mxu0 0.0
    %481 = vmatpush.xpose.msra.mxu0 0.0
    %482 = vmatpush.xpose.msra.mxu0 0.0
    %483 = vmatpush.xpose.msra.mxu0 0.0
    %484 = vmatpush.xpose.msra.mxu0 0.0
    %485 = vmatpush.xpose.msra.mxu0 0.0
    %486 = vmatpush.xpose.msra.mxu0 %v469
    %487 = vmatmul.f32.gmra.mxu0 %v466
    %v488 = vpop.f32.mrf.mxu0
    %v489 = vadd.f32 0.0, %v488
    %490 = vdwg.mxu0
    %v491 = vmul.f32 %v463, 0.25
    %v492 = vmul.f32 %v489, 0.25
    %v493 = vsel %vm271, %v491, -inf
    %494 = vmax.xlane.f32.xlu0 %v493
    %v495 = vpop.xlane.xlu0 %494
    %v496 = vsel %vm271, %v492, -inf
    %497 = vmax.xlane.f32.xlu0 %v496
    %v498 = vpop.xlane.xlu0 %497
    %v499 = vsub.f32 %v491, %v495
    %v500 = vsub.f32 %v492, %v498
    %v501 = vmul.f32 %v499, 1.442695
    %v502 = vpow.pop %v501
    %v503 = vmul.f32 %v500, 1.442695
    %v504 = vpow.pop %v503
    %v505 = vsel %vm271, %v502, 0.0
    %506 = vadd.xlane.f32.xlu0 %v505
    %v507 = vpop.xlane.xlu0 %506
    %v508 = vsel %vm271, %v504, 0.0
    %509 = vadd.xlane.f32.xlu0 %v508
    %v510 = vpop.xlane.xlu0 %509
    %v511 = vrcp.pop %v507
    %v512 = vrcp.pop %v510
    %v513 = vmul.f32 %v502, %v511
    %v514 = vmul.f32 %v504, %v512
    %v516 = vsel %vm271, %v513, 0
    %518 = vmatpush.msra.mxu0 0.0
    %519 = vmatpush.msra.mxu0 0.0
    %520 = vmatpush.msra.mxu0 0.0
    %521 = vmatpush.msra.mxu0 0.0
    %522 = vmatpush.msra.mxu0 0.0
    %523 = vmatpush.msra.mxu0 0.0
    %524 = vmatpush.msra.mxu0 0.0
    %525 = vmatpush.msra.mxu0 0.0
    %526 = vmatpush.msra.mxu0 0.0
    %527 = vmatpush.msra.mxu0 0.0
    %528 = vmatpush.msra.mxu0 0.0
    %529 = vmatpush.msra.mxu0 0.0
    %530 = vmatpush.msra.mxu0 0.0
    %531 = vmatpush.msra.mxu0 0.0
    %532 = vmatpush.msra.mxu0 0.0
    %533 = vmatpush.msra.mxu0 %v434
    %534 = vmatmul.f32.gmra.mxu0 %v516
    %v535 = vpop.f32.mrf.mxu0
    %v536 = vadd.f32 0.0, %v535
    %537 = vdwg.mxu0
    %v539 = vsel %vm271, %v514, 0
    %541 = vmatpush.msra.mxu0 0.0
    %542 = vmatpush.msra.mxu0 0.0
    %543 = vmatpush.msra.mxu0 0.0
    %544 = vmatpush.msra.mxu0 0.0
    %545 = vmatpush.msra.mxu0 0.0
    %546 = vmatpush.msra.mxu0 0.0
    %547 = vmatpush.msra.mxu0 0.0
    %548 = vmatpush.msra.mxu0 0.0
    %549 = vmatpush.msra.mxu0 0.0
    %550 = vmatpush.msra.mxu0 0.0
    %551 = vmatpush.msra.mxu0 0.0
    %552 = vmatpush.msra.mxu0 0.0
    %553 = vmatpush.msra.mxu0 0.0
    %554 = vmatpush.msra.mxu0 0.0
    %555 = vmatpush.msra.mxu0 0.0
    %556 = vmatpush.msra.mxu0 %v437
    %557 = vmatmul.f32.gmra.mxu0 %v539
    %v558 = vpop.f32.mrf.mxu0
    %v559 = vadd.f32 0.0, %v558
    %560 = vdwg.mxu0
    %v561 = vld [vmem:[%s10] sm:$0x1]
    %v562 = vld [vmem:[%s9] sm:$0xff]
    %v563 = vld [vmem:[%s9 + $0x8] sm:$0xff]
    %v565 = vsel %vm216, %v315, 0
    %v568 = vsel %vm216, %v338, 0
    %570 = vmatpush.msra.mxu0 0.0
    %571 = vmatpush.msra.mxu0 0.0
    %572 = vmatpush.msra.mxu0 0.0
    %573 = vmatpush.msra.mxu0 0.0
    %574 = vmatpush.msra.mxu0 0.0
    %575 = vmatpush.msra.mxu0 0.0
    %576 = vmatpush.msra.mxu0 0.0
    %577 = vmatpush.msra.mxu0 0.0
    %578 = vmatpush.msra.mxu0 0.0
    %579 = vmatpush.msra.mxu0 0.0
    %580 = vmatpush.msra.mxu0 0.0
    %581 = vmatpush.msra.mxu0 0.0
    %582 = vmatpush.msra.mxu0 0.0
    %583 = vmatpush.msra.mxu0 0.0
    %584 = vmatpush.msra.mxu0 %v563
    %585 = vmatpush.msra.mxu0 %v562
    %586 = vmatmul.f32.gmra.mxu0 %v565
    %v587 = vpop.f32.mrf.mxu0
    %v588 = vadd.f32 0.0, %v587
    %589 = vmatmul.f32.gmra.mxu0 %v568
    %v590 = vpop.f32.mrf.mxu0
    %v591 = vadd.f32 0.0, %v590
    %592 = vdwg.mxu0
    %v594 = vperm.slane %v561, 0
    %v596 = vadd.f32 %v594, %v588
    %v597 = vadd.f32 %v594, %v591
    %s598 = scalar_lea.vmem %s9, 16
    %v599 = vld [vmem:[%s598] sm:$0xff]
    %v600 = vld [vmem:[%s598 + $0x8] sm:$0xff]
    %v602 = vsel %vm216, %v536, 0
    %v605 = vsel %vm216, %v559, 0
    %607 = vmatpush.msra.mxu0 0.0
    %608 = vmatpush.msra.mxu0 0.0
    %609 = vmatpush.msra.mxu0 0.0
    %610 = vmatpush.msra.mxu0 0.0
    %611 = vmatpush.msra.mxu0 0.0
    %612 = vmatpush.msra.mxu0 0.0
    %613 = vmatpush.msra.mxu0 0.0
    %614 = vmatpush.msra.mxu0 0.0
    %615 = vmatpush.msra.mxu0 0.0
    %616 = vmatpush.msra.mxu0 0.0
    %617 = vmatpush.msra.mxu0 0.0
    %618 = vmatpush.msra.mxu0 0.0
    %619 = vmatpush.msra.mxu0 0.0
    %620 = vmatpush.msra.mxu0 0.0
    %621 = vmatpush.msra.mxu0 %v600
    %622 = vmatpush.msra.mxu0 %v599
    %623 = vmatmul.f32.gmra.mxu0 %v602
    %v624 = vpop.f32.mrf.mxu0
    %v625 = vadd.f32 0.0, %v624
    %626 = vmatmul.f32.gmra.mxu0 %v605
    %v627 = vpop.f32.mrf.mxu0
    %v628 = vadd.f32 0.0, %v627
    %629 = vdwg.mxu0
    %v630 = vadd.f32 %v596, %v625
    %v631 = vadd.f32 %v597, %v628
    %v632 = vadd.f32 %v111, %v630
    %v633 = vadd.f32 %v114, %v631
    %v634 = vld [vmem:[%s15] sm:$0x1]
    %v635 = vld [vmem:[%s16] sm:$0x1]
    %v636 = vsel %vm124, %v632, 0.0
    %637 = vadd.xlane.f32.xlu0 %v636
    %v638 = vpop.xlane.xlu0 %637
    %v639 = vsel %vm124, %v633, 0.0
    %640 = vadd.xlane.f32.xlu0 %v639
    %v641 = vpop.xlane.xlu0 %640
    %v642 = vrcp.pop 32.0
    %v643 = vmul.f32 32.0, %v642
    %v644 = vsub.f32 1.0, %v643
    %v645 = vmul.f32 %v642, %v644
    %v646 = vadd.f32 %v642, %v645
    %vm647 = vweird.f32 %v642
    %v648 = vsel %vm647, %v642, %v646
    %v649 = vmul.f32 %v638, %v648
    %v650 = vmul.f32 %v641, %v648
    %v651 = vsub.f32 %v632, %v649
    %v652 = vsub.f32 %v633, %v650
    %v653 = vmul.f32 %v651, %v651
    %v654 = vmul.f32 %v652, %v652
    %v655 = vsel %vm124, %v653, 0.0
    %656 = vadd.xlane.f32.xlu0 %v655
    %v657 = vpop.xlane.xlu0 %656
    %v658 = vsel %vm124, %v654, 0.0
    %659 = vadd.xlane.f32.xlu0 %v658
    %v660 = vpop.xlane.xlu0 %659
    %v661 = vmul.f32 %v657, %v648
    %v662 = vmul.f32 %v660, %v648
    %v663 = vadd.f32 %v661, 1e-05
    %v664 = vadd.f32 %v662, 1e-05
    %v665 = vrsqrt.pop %v663
    %v666 = vmul.f32 %v665, %v663
    %v667 = vmul.f32 %v666, %v665
    %v668 = vmul.f32 0.5, %v667
    %v669 = vsub.f32 1.5, %v668
    %v670 = vmul.f32 %v665, %v669
    %vm671 = vweird.f32 %v663
    %vm672 = vweird.f32 %v665
    %vm673 = vmor %vm671, %vm672
    %v674 = vsel %vm673, %v665, %v670
    %v675 = vrsqrt.pop %v664
    %v676 = vmul.f32 %v675, %v664
    %v677 = vmul.f32 %v676, %v675
    %v678 = vmul.f32 0.5, %v677
    %v679 = vsub.f32 1.5, %v678
    %v680 = vmul.f32 %v675, %v679
    %vm681 = vweird.f32 %v664
    %vm682 = vweird.f32 %v675
    %vm683 = vmor %vm681, %vm682
    %v684 = vsel %vm683, %v675, %v680
    %v685 = vmul.f32 %v651, %v674
    %v686 = vmul.f32 %v652, %v684
    %v688 = vperm.slane %v634, 0
    %v690 = vmul.f32 %v685, %v688
    %v691 = vmul.f32 %v686, %v688
    %v693 = vperm.slane %v635, 0
    %v695 = vadd.f32 %v690, %v693
    %v696 = vadd.f32 %v691, %v693
    %v697 = vld [vmem:[%s11] sm:$0xff]
    %v698 = vld [vmem:[%s11 + $0x8] sm:$0xff]
    %v699 = vld [vmem:[%s11 + $0x10] sm:$0xff]
    %v700 = vld [vmem:[%s11 + $0x18] sm:$0xff]
    %v701 = vld [vmem:[%s12] sm:$0x1]
    %v703 = vperm.slane %v701, 0
    %v706 = vsel %vm124, %v695, 0
    %v709 = vsel %vm124, %v696, 0
    %711 = vmatpush.msra.mxu0 0.0
    %712 = vmatpush.msra.mxu0 0.0
    %713 = vmatpush.msra.mxu0 0.0
    %714 = vmatpush.msra.mxu0 0.0
    %715 = vmatpush.msra.mxu0 0.0
    %716 = vmatpush.msra.mxu0 0.0
    %717 = vmatpush.msra.mxu0 0.0
    %718 = vmatpush.msra.mxu0 0.0
    %719 = vmatpush.msra.mxu0 0.0
    %720 = vmatpush.msra.mxu0 0.0
    %721 = vmatpush.msra.mxu0 0.0
    %722 = vmatpush.msra.mxu0 0.0
    %723 = vmatpush.msra.mxu0 %v700
    %724 = vmatpush.msra.mxu0 %v699
    %725 = vmatpush.msra.mxu0 %v698
    %726 = vmatpush.msra.mxu0 %v697
    %727 = vmatmul.f32.gmra.mxu0 %v706
    %v728 = vpop.f32.mrf.mxu0
    %v729 = vadd.f32 %v703, %v728
    %730 = vmatmul.f32.gmra.mxu0 %v709
    %v731 = vpop.f32.mrf.mxu0
    %v732 = vadd.f32 %v703, %v731
    %733 = vdwg.mxu0
    %v734 = vmax.f32 %v729, 0.0
    %v735 = vmax.f32 %v732, 0.0
    %v736 = vld [vmem:[%s13] sm:$0xff]
    %v737 = vld [vmem:[%s13 + $0x8] sm:$0xff]
    %v738 = vld [vmem:[%s13 + $0x10] sm:$0xff]
    %v739 = vld [vmem:[%s13 + $0x18] sm:$0xff]
    %v740 = vld [vmem:[%s13 + $0x20] sm:$0xff]
    %v741 = vld [vmem:[%s13 + $0x28] sm:$0xff]
    %v742 = vld [vmem:[%s13 + $0x30] sm:$0xff]
    %v743 = vld [vmem:[%s13 + $0x38] sm:$0xff]
    %v744 = vld [vmem:[%s13 + $0x40] sm:$0xff]
    %v745 = vld [vmem:[%s13 + $0x48] sm:$0xff]
    %v746 = vld [vmem:[%s13 + $0x50] sm:$0xff]
    %v747 = vld [vmem:[%s13 + $0x58] sm:$0xff]
    %v748 = vld [vmem:[%s13 + $0x60] sm:$0xff]
    %v749 = vld [vmem:[%s13 + $0x68] sm:$0xff]
    %v750 = vld [vmem:[%s13 + $0x70] sm:$0xff]
    %v751 = vld [vmem:[%s13 + $0x78] sm:$0xff]
    %v752 = vld [vmem:[%s14] sm:$0x1]
    %v754 = vperm.slane %v752, 0
    %756 = vmatpush.msra.mxu0 %v751
    %757 = vmatpush.msra.mxu0 %v750
    %758 = vmatpush.msra.mxu0 %v749
    %759 = vmatpush.msra.mxu0 %v748
    %760 = vmatpush.msra.mxu0 %v747
    %761 = vmatpush.msra.mxu0 %v746
    %762 = vmatpush.msra.mxu0 %v745
    %763 = vmatpush.msra.mxu0 %v744
    %764 = vmatpush.msra.mxu0 %v743
    %765 = vmatpush.msra.mxu0 %v742
    %766 = vmatpush.msra.mxu0 %v741
    %767 = vmatpush.msra.mxu0 %v740
    %768 = vmatpush.msra.mxu0 %v739
    %769 = vmatpush.msra.mxu0 %v738
    %770 = vmatpush.msra.mxu0 %v737
    %771 = vmatpush.msra.mxu0 %v736
    %772 = vmatmul.f32.gmra.mxu0 %v734
    %v773 = vpop.f32.mrf.mxu0
    %v774 = vadd.f32 %v754, %v773
    %775 = vmatmul.f32.gmra.mxu0 %v735
    %v776 = vpop.f32.mrf.mxu0
    %v777 = vadd.f32 %v754, %v776
    %778 = vdwg.mxu0
    %v779 = vadd.f32 %v695, %v774
    %v780 = vadd.f32 %v696, %v777
    %v781 = vld [vmem:[%s17] sm:$0x1]
    %v782 = vld [vmem:[%s18] sm:$0x1]
    %v783 = vsel %vm124, %v779, 0.0
    %784 = vadd.xlane.f32.xlu0 %v783
    %v785 = vpop.xlane.xlu0 %784
    %v786 = vsel %vm124, %v780, 0.0
    %787 = vadd.xlane.f32.xlu0 %v786
    %v788 = vpop.xlane.xlu0 %787
    %v789 = vmul.f32 %v785, %v648
    %v790 = vmul.f32 %v788, %v648
    %v791 = vsub.f32 %v779, %v789
    %v792 = vsub.f32 %v780, %v790
    %v793 = vmul.f32 %v791, %v791
    %v794 = vmul.f32 %v792, %v792
    %v795 = vsel %vm124, %v793, 0.0
    %796 = vadd.xlane.f32.xlu0 %v795
    %v797 = vpop.xlane.xlu0 %796
    %v798 = vsel %vm124, %v794, 0.0
    %799 = vadd.xlane.f32.xlu0 %v798
    %v800 = vpop.xlane.xlu0 %799
    %v801 = vmul.f32 %v797, %v648
    %v802 = vmul.f32 %v800, %v648
    %v803 = vadd.f32 %v801, 1e-05
    %v804 = vadd.f32 %v802, 1e-05
    %v805 = vrsqrt.pop %v803
    %v806 = vmul.f32 %v805, %v803
    %v807 = vmul.f32 %v806, %v805
    %v808 = vmul.f32 0.5, %v807
    %v809 = vsub.f32 1.5, %v808
    %v810 = vmul.f32 %v805, %v809
    %vm811 = vweird.f32 %v803
    %vm812 = vweird.f32 %v805
    %vm813 = vmor %vm811, %vm812
    %v814 = vsel %vm813, %v805, %v810
    %v815 = vrsqrt.pop %v804
    %v816 = vmul.f32 %v815, %v804
    %v817 = vmul.f32 %v816, %v815
    %v818 = vmul.f32 0.5, %v817
    %v819 = vsub.f32 1.5, %v818
    %v820 = vmul.f32 %v815, %v819
    %vm821 = vweird.f32 %v804
    %vm822 = vweird.f32 %v815
    %vm823 = vmor %vm821, %vm822
    %v824 = vsel %vm823, %v815, %v820
    %v825 = vmul.f32 %v791, %v814
    %v826 = vmul.f32 %v792, %v824
    %v828 = vperm.slane %v781, 0
    %v830 = vmul.f32 %v825, %v828
    %v831 = vmul.f32 %v826, %v828
    %v833 = vperm.slane %v782, 0
    %v835 = vadd.f32 %v830, %v833
    %v836 = vadd.f32 %v831, %v833
    %s837 = scalar_lea.vmem %s3, 64
    %v838 = vld [vmem:[%s837] sm:$0xff]
    %v839 = vld [vmem:[%s837 + $0x8] sm:$0xff]
    %v840 = vld [vmem:[%s837 + $0x10] sm:$0xff]
    %v841 = vld [vmem:[%s837 + $0x18] sm:$0xff]
    %s842 = scalar_lea.vmem %s4, 2
    %v843 = vld [vmem:[%s842] sm:$0x1]
    %v845 = vperm.slane %v843, 0
    %v848 = vsel %vm124, %v835, 0
    %v851 = vsel %vm124, %v836, 0
    %853 = vmatpush.msra.mxu0 0.0
    %854 = vmatpush.msra.mxu0 0.0
    %855 = vmatpush.msra.mxu0 0.0
    %856 = vmatpush.msra.mxu0 0.0
    %857 = vmatpush.msra.mxu0 0.0
    %858 = vmatpush.msra.mxu0 0.0
    %859 = vmatpush.msra.mxu0 0.0
    %860 = vmatpush.msra.mxu0 0.0
    %861 = vmatpush.msra.mxu0 0.0
    %862 = vmatpush.msra.mxu0 0.0
    %863 = vmatpush.msra.mxu0 0.0
    %864 = vmatpush.msra.mxu0 0.0
    %865 = vmatpush.msra.mxu0 %v841
    %866 = vmatpush.msra.mxu0 %v840
    %867 = vmatpush.msra.mxu0 %v839
    %868 = vmatpush.msra.mxu0 %v838
    %869 = vmatmul.f32.gmra.mxu0 %v848
    %v870 = vpop.f32.mrf.mxu0
    %v871 = vadd.f32 %v845, %v870
    %872 = vmatmul.f32.gmra.mxu0 %v851
    %v873 = vpop.f32.mrf.mxu0
    %v874 = vadd.f32 %v845, %v873
    %875 = vdwg.mxu0
    %s876 = scalar_lea.vmem %s5, 64
    %v877 = vld [vmem:[%s876] sm:$0xff]
    %v878 = vld [vmem:[%s876 + $0x8] sm:$0xff]
    %v879 = vld [vmem:[%s876 + $0x10] sm:$0xff]
    %v880 = vld [vmem:[%s876 + $0x18] sm:$0xff]
    %s881 = scalar_lea.vmem %s6, 2
    %v882 = vld [vmem:[%s881] sm:$0x1]
    %v884 = vperm.slane %v882, 0
    %886 = vmatpush.msra.mxu0 0.0
    %887 = vmatpush.msra.mxu0 0.0
    %888 = vmatpush.msra.mxu0 0.0
    %889 = vmatpush.msra.mxu0 0.0
    %890 = vmatpush.msra.mxu0 0.0
    %891 = vmatpush.msra.mxu0 0.0
    %892 = vmatpush.msra.mxu0 0.0
    %893 = vmatpush.msra.mxu0 0.0
    %894 = vmatpush.msra.mxu0 0.0
    %895 = vmatpush.msra.mxu0 0.0
    %896 = vmatpush.msra.mxu0 0.0
    %897 = vmatpush.msra.mxu0 0.0
    %898 = vmatpush.msra.mxu0 %v880
    %899 = vmatpush.msra.mxu0 %v879
    %900 = vmatpush.msra.mxu0 %v878
    %901 = vmatpush.msra.mxu0 %v877
    %902 = vmatmul.f32.gmra.mxu0 %v848
    %v903 = vpop.f32.mrf.mxu0
    %v904 = vadd.f32 %v884, %v903
    %905 = vmatmul.f32.gmra.mxu0 %v851
    %v906 = vpop.f32.mrf.mxu0
    %v907 = vadd.f32 %v884, %v906
    %908 = vdwg.mxu0
    %s909 = scalar_lea.vmem %s7, 64
    %v910 = vld [vmem:[%s909] sm:$0xff]
    %v911 = vld [vmem:[%s909 + $0x8] sm:$0xff]
    %v912 = vld [vmem:[%s909 + $0x10] sm:$0xff]
    %v913 = vld [vmem:[%s909 + $0x18] sm:$0xff]
    %s914 = scalar_lea.vmem %s8, 2
    %v915 = vld [vmem:[%s914] sm:$0x1]
    %v917 = vperm.slane %v915, 0
    %919 = vmatpush.msra.mxu0 0.0
    %920 = vmatpush.msra.mxu0 0.0
    %921 = vmatpush.msra.mxu0 0.0
    %922 = vmatpush.msra.mxu0 0.0
    %923 = vmatpush.msra.mxu0 0.0
    %924 = vmatpush.msra.mxu0 0.0
    %925 = vmatpush.msra.mxu0 0.0
    %926 = vmatpush.msra.mxu0 0.0
    %927 = vmatpush.msra.mxu0 0.0
    %928 = vmatpush.msra.mxu0 0.0
    %929 = vmatpush.msra.mxu0 0.0
    %930 = vmatpush.msra.mxu0 0.0
    %931 = vmatpush.msra.mxu0 %v913
    %932 = vmatpush.msra.mxu0 %v912
    %933 = vmatpush.msra.mxu0 %v911
    %934 = vmatpush.msra.mxu0 %v910
    %935 = vmatmul.f32.gmra.mxu0 %v848
    %v936 = vpop.f32.mrf.mxu0
    %v937 = vadd.f32 %v917, %v936
    %938 = vmatmul.f32.gmra.mxu0 %v851
    %v939 = vpop.f32.mrf.mxu0
    %v940 = vadd.f32 %v917, %v939
    %941 = vdwg.mxu0
    %v943 = vsel %vm216, %v871, 0
    %v946 = vsel %vm216, %v904, 0
    %948 = vmatpush.xpose.msra.mxu0 0.0
    %949 = vmatpush.xpose.msra.mxu0 0.0
    %950 = vmatpush.xpose.msra.mxu0 0.0
    %951 = vmatpush.xpose.msra.mxu0 0.0
    %952 = vmatpush.xpose.msra.mxu0 0.0
    %953 = vmatpush.xpose.msra.mxu0 0.0
    %954 = vmatpush.xpose.msra.mxu0 0.0
    %955 = vmatpush.xpose.msra.mxu0 0.0
    %956 = vmatpush.xpose.msra.mxu0 0.0
    %957 = vmatpush.xpose.msra.mxu0 0.0
    %958 = vmatpush.xpose.msra.mxu0 0.0
    %959 = vmatpush.xpose.msra.mxu0 0.0
    %960 = vmatpush.xpose.msra.mxu0 0.0
    %961 = vmatpush.xpose.msra.mxu0 0.0
    %962 = vmatpush.xpose.msra.mxu0 0.0
    %963 = vmatpush.xpose.msra.mxu0 %v946
    %964 = vmatmul.f32.gmra.mxu0 %v943
    %v965 = vpop.f32.mrf.mxu0
    %v966 = vadd.f32 0.0, %v965
    %967 = vdwg.mxu0
    %v969 = vsel %vm216, %v874, 0
    %v972 = vsel %vm216, %v907, 0
    %974 = vmatpush.xpose.msra.mxu0 0.0
    %975 = vmatpush.xpose.msra.mxu0 0.0
    %976 = vmatpush.xpose.msra.mxu0 0.0
    %977 = vmatpush.xpose.msra.mxu0 0.0
    %978 = vmatpush.xpose.msra.mxu0 0.0
    %979 = vmatpush.xpose.msra.mxu0 0.0
    %980 = vmatpush.xpose.msra.mxu0 0.0
    %981 = vmatpush.xpose.msra.mxu0 0.0
    %982 = vmatpush.xpose.msra.mxu0 0.0
    %983 = vmatpush.xpose.msra.mxu0 0.0
    %984 = vmatpush.xpose.msra.mxu0 0.0
    %985 = vmatpush.xpose.msra.mxu0 0.0
    %986 = vmatpush.xpose.msra.mxu0 0.0
    %987 = vmatpush.xpose.msra.mxu0 0.0
    %988 = vmatpush.xpose.msra.mxu0 0.0
    %989 = vmatpush.xpose.msra.mxu0 %v972
    %990 = vmatmul.f32.gmra.mxu0 %v969
    %v991 = vpop.f32.mrf.mxu0
    %v992 = vadd.f32 0.0, %v991
    %993 = vdwg.mxu0
    %v994 = vmul.f32 %v966, 0.25
    %v995 = vmul.f32 %v992, 0.25
    %v996 = vsel %vm271, %v994, -inf
    %997 = vmax.xlane.f32.xlu0 %v996
    %v998 = vpop.xlane.xlu0 %997
    %v999 = vsel %vm271, %v995, -inf
    %1000 = vmax.xlane.f32.xlu0 %v999
    %v1001 = vpop.xlane.xlu0 %1000
    %v1002 = vsub.f32 %v994, %v998
    %v1003 = vsub.f32 %v995, %v1001
    %v1004 = vmul.f32 %v1002, 1.442695
    %v1005 = vpow.pop %v1004
    %v1006 = vmul.f32 %v1003, 1.442695
    %v1007 = vpow.pop %v1006
    %v1008 = vsel %vm271, %v1005, 0.0
    %1009 = vadd.xlane.f32.xlu0 %v1008
    %v1010 = vpop.xlane.xlu0 %1009
    %v1011 = vsel %vm271, %v1007, 0.0
    %1012 = vadd.xlane.f32.xlu0 %v1011
    %v1013 = vpop.xlane.xlu0 %1012
    %v1014 = vrcp.pop %v1010
    %v1015 = vrcp.pop %v1013
    %v1016 = vmul.f32 %v1005, %v1014
    %v1017 = vmul.f32 %v1007, %v1015
    %v1019 = vsel %vm271, %v1016, 0
    %1021 = vmatpush.msra.mxu0 0.0
    %1022 = vmatpush.msra.mxu0 0.0
    %1023 = vmatpush.msra.mxu0 0.0
    %1024 = vmatpush.msra.mxu0 0.0
    %1025 = vmatpush.msra.mxu0 0.0
    %1026 = vmatpush.msra.mxu0 0.0
    %1027 = vmatpush.msra.mxu0 0.0
    %1028 = vmatpush.msra.mxu0 0.0
    %1029 = vmatpush.msra.mxu0 0.0
    %1030 = vmatpush.msra.mxu0 0.0
    %1031 = vmatpush.msra.mxu0 0.0
    %1032 = vmatpush.msra.mxu0 0.0
    %1033 = vmatpush.msra.mxu0 0.0
    %1034 = vmatpush.msra.mxu0 0.0
    %1035 = vmatpush.msra.mxu0 0.0
    %1036 = vmatpush.msra.mxu0 %v937
    %1037 = vmatmul.f32.gmra.mxu0 %v1019
    %v1038 = vpop.f32.mrf.mxu0
    %v1039 = vadd.f32 0.0, %v1038
    %1040 = vdwg.mxu0
    %v1042 = vsel %vm271, %v1017, 0
    %1044 = vmatpush.msra.mxu0 0.0
    %1045 = vmatpush.msra.mxu0 0.0
    %1046 = vmatpush.msra.mxu0 0.0
    %1047 = vmatpush.msra.mxu0 0.0
    %1048 = vmatpush.msra.mxu0 0.0
    %1049 = vmatpush.msra.mxu0 0.0
    %1050 = vmatpush.msra.mxu0 0.0
    %1051 = vmatpush.msra.mxu0 0.0
    %1052 = vmatpush.msra.mxu0 0.0
    %1053 = vmatpush.msra.mxu0 0.0
    %1054 = vmatpush.msra.mxu0 0.0
    %1055 = vmatpush.msra.mxu0 0.0
    %1056 = vmatpush.msra.mxu0 0.0
    %1057 = vmatpush.msra.mxu0 0.0
    %1058 = vmatpush.msra.mxu0 0.0
    %1059 = vmatpush.msra.mxu0 %v940
    %1060 = vmatmul.f32.gmra.mxu0 %v1042
    %v1061 = vpop.f32.mrf.mxu0
    %v1062 = vadd.f32 0.0, %v1061
    %1063 = vdwg.mxu0
    %s1064 = scalar_lea.vmem %s3, 96
    %v1065 = vld [vmem:[%s1064] sm:$0xff]
    %v1066 = vld [vmem:[%s1064 + $0x8] sm:$0xff]
    %v1067 = vld [vmem:[%s1064 + $0x10] sm:$0xff]
    %v1068 = vld [vmem:[%s1064 + $0x18] sm:$0xff]
    %s1069 = scalar_lea.vmem %s4, 3
    %v1070 = vld [vmem:[%s1069] sm:$0x1]
    %v1072 = vperm.slane %v1070, 0
    %1074 = vmatpush.msra.mxu0 0.0
    %1075 = vmatpush.msra.mxu0 0.0
    %1076 = vmatpush.msra.mxu0 0.0
    %1077 = vmatpush.msra.mxu0 0.0
    %1078 = vmatpush.msra.mxu0 0.0
    %1079 = vmatpush.msra.mxu0 0.0
    %1080 = vmatpush.msra.mxu0 0.0
    %1081 = vmatpush.msra.mxu0 0.0
    %1082 = vmatpush.msra.mxu0 0.0
    %1083 = vmatpush.msra.mxu0 0.0
    %1084 = vmatpush.msra.mxu0 0.0
    %1085 = vmatpush.msra.mxu0 0.0
    %1086 = vmatpush.msra.mxu0 %v1068
    %1087 = vmatpush.msra.mxu0 %v1067
    %1088 = vmatpush.msra.mxu0 %v1066
    %1089 = vmatpush.msra.mxu0 %v1065
    %1090 = vmatmul.f32.gmra.mxu0 %v848
    %v1091 = vpop.f32.mrf.mxu0
    %v1092 = vadd.f32 %v1072, %v1091
    %1093 = vmatmul.f32.gmra.mxu0 %v851
    %v1094 = vpop.f32.mrf.mxu0
    %v1095 = vadd.f32 %v1072, %v1094
    %1096 = vdwg.mxu0
    %s1097 = scalar_lea.vmem %s5, 96
    %v1098 = vld [vmem:[%s1097] sm:$0xff]
    %v1099 = vld [vmem:[%s1097 + $0x8] sm:$0xff]
    %v1100 = vld [vmem:[%s1097 + $0x10] sm:$0xff]
    %v1101 = vld [vmem:[%s1097 + $0x18] sm:$0xff]
    %s1102 = scalar_lea.vmem %s6, 3
    %v1103 = vld [vmem:[%s1102] sm:$0x1]
    %v1105 = vperm.slane %v1103, 0
    %1107 = vmatpush.msra.mxu0 0.0
    %1108 = vmatpush.msra.mxu0 0.0
    %1109 = vmatpush.msra.mxu0 0.0
    %1110 = vmatpush.msra.mxu0 0.0
    %1111 = vmatpush.msra.mxu0 0.0
    %1112 = vmatpush.msra.mxu0 0.0
    %1113 = vmatpush.msra.mxu0 0.0
    %1114 = vmatpush.msra.mxu0 0.0
    %1115 = vmatpush.msra.mxu0 0.0
    %1116 = vmatpush.msra.mxu0 0.0
    %1117 = vmatpush.msra.mxu0 0.0
    %1118 = vmatpush.msra.mxu0 0.0
    %1119 = vmatpush.msra.mxu0 %v1101
    %1120 = vmatpush.msra.mxu0 %v1100
    %1121 = vmatpush.msra.mxu0 %v1099
    %1122 = vmatpush.msra.mxu0 %v1098
    %1123 = vmatmul.f32.gmra.mxu0 %v848
    %v1124 = vpop.f32.mrf.mxu0
    %v1125 = vadd.f32 %v1105, %v1124
    %1126 = vmatmul.f32.gmra.mxu0 %v851
    %v1127 = vpop.f32.mrf.mxu0
    %v1128 = vadd.f32 %v1105, %v1127
    %1129 = vdwg.mxu0
    %s1130 = scalar_lea.vmem %s7, 96
    %v1131 = vld [vmem:[%s1130] sm:$0xff]
    %v1132 = vld [vmem:[%s1130 + $0x8] sm:$0xff]
    %v1133 = vld [vmem:[%s1130 + $0x10] sm:$0xff]
    %v1134 = vld [vmem:[%s1130 + $0x18] sm:$0xff]
    %s1135 = scalar_lea.vmem %s8, 3
    %v1136 = vld [vmem:[%s1135] sm:$0x1]
    %v1138 = vperm.slane %v1136, 0
    %1140 = vmatpush.msra.mxu0 0.0
    %1141 = vmatpush.msra.mxu0 0.0
    %1142 = vmatpush.msra.mxu0 0.0
    %1143 = vmatpush.msra.mxu0 0.0
    %1144 = vmatpush.msra.mxu0 0.0
    %1145 = vmatpush.msra.mxu0 0.0
    %1146 = vmatpush.msra.mxu0 0.0
    %1147 = vmatpush.msra.mxu0 0.0
    %1148 = vmatpush.msra.mxu0 0.0
    %1149 = vmatpush.msra.mxu0 0.0
    %1150 = vmatpush.msra.mxu0 0.0
    %1151 = vmatpush.msra.mxu0 0.0
    %1152 = vmatpush.msra.mxu0 %v1134
    %1153 = vmatpush.msra.mxu0 %v1133
    %1154 = vmatpush.msra.mxu0 %v1132
    %1155 = vmatpush.msra.mxu0 %v1131
    %1156 = vmatmul.f32.gmra.mxu0 %v848
    %v1157 = vpop.f32.mrf.mxu0
    %v1158 = vadd.f32 %v1138, %v1157
    %1159 = vmatmul.f32.gmra.mxu0 %v851
    %v1160 = vpop.f32.mrf.mxu0
    %v1161 = vadd.f32 %v1138, %v1160
    %1162 = vdwg.mxu0
    %v1164 = vsel %vm216, %v1092, 0
    %v1167 = vsel %vm216, %v1125, 0
    %1169 = vmatpush.xpose.msra.mxu0 0.0
    %1170 = vmatpush.xpose.msra.mxu0 0.0
    %1171 = vmatpush.xpose.msra.mxu0 0.0
    %1172 = vmatpush.xpose.msra.mxu0 0.0
    %1173 = vmatpush.xpose.msra.mxu0 0.0
    %1174 = vmatpush.xpose.msra.mxu0 0.0
    %1175 = vmatpush.xpose.msra.mxu0 0.0
    %1176 = vmatpush.xpose.msra.mxu0 0.0
    %1177 = vmatpush.xpose.msra.mxu0 0.0
    %1178 = vmatpush.xpose.msra.mxu0 0.0
    %1179 = vmatpush.xpose.msra.mxu0 0.0
    %1180 = vmatpush.xpose.msra.mxu0 0.0
    %1181 = vmatpush.xpose.msra.mxu0 0.0
    %1182 = vmatpush.xpose.msra.mxu0 0.0
    %1183 = vmatpush.xpose.msra.mxu0 0.0
    %1184 = vmatpush.xpose.msra.mxu0 %v1167
    %1185 = vmatmul.f32.gmra.mxu0 %v1164
    %v1186 = vpop.f32.mrf.mxu0
    %v1187 = vadd.f32 0.0, %v1186
    %1188 = vdwg.mxu0
    %v1190 = vsel %vm216, %v1095, 0
    %v1193 = vsel %vm216, %v1128, 0
    %1195 = vmatpush.xpose.msra.mxu0 0.0
    %1196 = vmatpush.xpose.msra.mxu0 0.0
    %1197 = vmatpush.xpose.msra.mxu0 0.0
    %1198 = vmatpush.xpose.msra.mxu0 0.0
    %1199 = vmatpush.xpose.msra.mxu0 0.0
    %1200 = vmatpush.xpose.msra.mxu0 0.0
    %1201 = vmatpush.xpose.msra.mxu0 0.0
    %1202 = vmatpush.xpose.msra.mxu0 0.0
    %1203 = vmatpush.xpose.msra.mxu0 0.0
    %1204 = vmatpush.xpose.msra.mxu0 0.0
    %1205 = vmatpush.xpose.msra.mxu0 0.0
    %1206 = vmatpush.xpose.msra.mxu0 0.0
    %1207 = vmatpush.xpose.msra.mxu0 0.0
    %1208 = vmatpush.xpose.msra.mxu0 0.0
    %1209 = vmatpush.xpose.msra.mxu0 0.0
    %1210 = vmatpush.xpose.msra.mxu0 %v1193
    %1211 = vmatmul.f32.gmra.mxu0 %v1190
    %v1212 = vpop.f32.mrf.mxu0
    %v1213 = vadd.f32 0.0, %v1212
    %1214 = vdwg.mxu0
    %v1215 = vmul.f32 %v1187, 0.25
    %v1216 = vmul.f32 %v1213, 0.25
    %v1217 = vsel %vm271, %v1215, -inf
    %1218 = vmax.xlane.f32.xlu0 %v1217
    %v1219 = vpop.xlane.xlu0 %1218
    %v1220 = vsel %vm271, %v1216, -inf
    %1221 = vmax.xlane.f32.xlu0 %v1220
    %v1222 = vpop.xlane.xlu0 %1221
    %v1223 = vsub.f32 %v1215, %v1219
    %v1224 = vsub.f32 %v1216, %v1222
    %v1225 = vmul.f32 %v1223, 1.442695
    %v1226 = vpow.pop %v1225
    %v1227 = vmul.f32 %v1224, 1.442695
    %v1228 = vpow.pop %v1227
    %v1229 = vsel %vm271, %v1226, 0.0
    %1230 = vadd.xlane.f32.xlu0 %v1229
    %v1231 = vpop.xlane.xlu0 %1230
    %v1232 = vsel %vm271, %v1228, 0.0
    %1233 = vadd.xlane.f32.xlu0 %v1232
    %v1234 = vpop.xlane.xlu0 %1233
    %v1235 = vrcp.pop %v1231
    %v1236 = vrcp.pop %v1234
    %v1237 = vmul.f32 %v1226, %v1235
    %v1238 = vmul.f32 %v1228, %v1236
    %v1240 = vsel %vm271, %v1237, 0
    %1242 = vmatpush.msra.mxu0 0.0
    %1243 = vmatpush.msra.mxu0 0.0
    %1244 = vmatpush.msra.mxu0 0.0
    %1245 = vmatpush.msra.mxu0 0.0
    %1246 = vmatpush.msra.mxu0 0.0
    %1247 = vmatpush.msra.mxu0 0.0
    %1248 = vmatpush.msra.mxu0 0.0
    %1249 = vmatpush.msra.mxu0 0.0
    %1250 = vmatpush.msra.mxu0 0.0
    %1251 = vmatpush.msra.mxu0 0.0
    %1252 = vmatpush.msra.mxu0 0.0
    %1253 = vmatpush.msra.mxu0 0.0
    %1254 = vmatpush.msra.mxu0 0.0
    %1255 = vmatpush.msra.mxu0 0.0
    %1256 = vmatpush.msra.mxu0 0.0
    %1257 = vmatpush.msra.mxu0 %v1158
    %1258 = vmatmul.f32.gmra.mxu0 %v1240
    %v1259 = vpop.f32.mrf.mxu0
    %v1260 = vadd.f32 0.0, %v1259
    %1261 = vdwg.mxu0
    %v1263 = vsel %vm271, %v1238, 0
    %1265 = vmatpush.msra.mxu0 0.0
    %1266 = vmatpush.msra.mxu0 0.0
    %1267 = vmatpush.msra.mxu0 0.0
    %1268 = vmatpush.msra.mxu0 0.0
    %1269 = vmatpush.msra.mxu0 0.0
    %1270 = vmatpush.msra.mxu0 0.0
    %1271 = vmatpush.msra.mxu0 0.0
    %1272 = vmatpush.msra.mxu0 0.0
    %1273 = vmatpush.msra.mxu0 0.0
    %1274 = vmatpush.msra.mxu0 0.0
    %1275 = vmatpush.msra.mxu0 0.0
    %1276 = vmatpush.msra.mxu0 0.0
    %1277 = vmatpush.msra.mxu0 0.0
    %1278 = vmatpush.msra.mxu0 0.0
    %1279 = vmatpush.msra.mxu0 0.0
    %1280 = vmatpush.msra.mxu0 %v1161
    %1281 = vmatmul.f32.gmra.mxu0 %v1263
    %v1282 = vpop.f32.mrf.mxu0
    %v1283 = vadd.f32 0.0, %v1282
    %1284 = vdwg.mxu0
    %s1285 = scalar_lea.vmem %s10, 1
    %v1286 = vld [vmem:[%s1285] sm:$0x1]
    %s1287 = scalar_lea.vmem %s9, 32
    %v1288 = vld [vmem:[%s1287] sm:$0xff]
    %v1289 = vld [vmem:[%s1287 + $0x8] sm:$0xff]
    %v1291 = vsel %vm216, %v1039, 0
    %v1294 = vsel %vm216, %v1062, 0
    %1296 = vmatpush.msra.mxu0 0.0
    %1297 = vmatpush.msra.mxu0 0.0
    %1298 = vmatpush.msra.mxu0 0.0
    %1299 = vmatpush.msra.mxu0 0.0
    %1300 = vmatpush.msra.mxu0 0.0
    %1301 = vmatpush.msra.mxu0 0.0
    %1302 = vmatpush.msra.mxu0 0.0
    %1303 = vmatpush.msra.mxu0 0.0
    %1304 = vmatpush.msra.mxu0 0.0
    %1305 = vmatpush.msra.mxu0 0.0
    %1306 = vmatpush.msra.mxu0 0.0
    %1307 = vmatpush.msra.mxu0 0.0
    %1308 = vmatpush.msra.mxu0 0.0
    %1309 = vmatpush.msra.mxu0 0.0
    %1310 = vmatpush.msra.mxu0 %v1289
    %1311 = vmatpush.msra.mxu0 %v1288
    %1312 = vmatmul.f32.gmra.mxu0 %v1291
    %v1313 = vpop.f32.mrf.mxu0
    %v1314 = vadd.f32 0.0, %v1313
    %1315 = vmatmul.f32.gmra.mxu0 %v1294
    %v1316 = vpop.f32.mrf.mxu0
    %v1317 = vadd.f32 0.0, %v1316
    %1318 = vdwg.mxu0
    %v1320 = vperm.slane %v1286, 0
    %v1322 = vadd.f32 %v1320, %v1314
    %v1323 = vadd.f32 %v1320, %v1317
    %s1324 = scalar_lea.vmem %s9, 48
    %v1325 = vld [vmem:[%s1324] sm:$0xff]
    %v1326 = vld [vmem:[%s1324 + $0x8] sm:$0xff]
    %v1328 = vsel %vm216, %v1260, 0
    %v1331 = vsel %vm216, %v1283, 0
    %1333 = vmatpush.msra.mxu0 0.0
    %1334 = vmatpush.msra.mxu0 0.0
    %1335 = vmatpush.msra.mxu0 0.0
    %1336 = vmatpush.msra.mxu0 0.0
    %1337 = vmatpush.msra.mxu0 0.0
    %1338 = vmatpush.msra.mxu0 0.0
    %1339 = vmatpush.msra.mxu0 0.0
    %1340 = vmatpush.msra.mxu0 0.0
    %1341 = vmatpush.msra.mxu0 0.0
    %1342 = vmatpush.msra.mxu0 0.0
    %1343 = vmatpush.msra.mxu0 0.0
    %1344 = vmatpush.msra.mxu0 0.0
    %1345 = vmatpush.msra.mxu0 0.0
    %1346 = vmatpush.msra.mxu0 0.0
    %1347 = vmatpush.msra.mxu0 %v1326
    %1348 = vmatpush.msra.mxu0 %v1325
    %1349 = vmatmul.f32.gmra.mxu0 %v1328
    %v1350 = vpop.f32.mrf.mxu0
    %v1351 = vadd.f32 0.0, %v1350
    %1352 = vmatmul.f32.gmra.mxu0 %v1331
    %v1353 = vpop.f32.mrf.mxu0
    %v1354 = vadd.f32 0.0, %v1353
    %1355 = vdwg.mxu0
    %v1356 = vadd.f32 %v1322, %v1351
    %v1357 = vadd.f32 %v1323, %v1354
    %v1358 = vadd.f32 %v835, %v1356
    %v1359 = vadd.f32 %v836, %v1357
    %s1360 = scalar_lea.vmem %s15, 1
    %v1361 = vld [vmem:[%s1360] sm:$0x1]
    %s1362 = scalar_lea.vmem %s16, 1
    %v1363 = vld [vmem:[%s1362] sm:$0x1]
    %v1364 = vsel %vm124, %v1358, 0.0
    %1365 = vadd.xlane.f32.xlu0 %v1364
    %v1366 = vpop.xlane.xlu0 %1365
    %v1367 = vsel %vm124, %v1359, 0.0
    %1368 = vadd.xlane.f32.xlu0 %v1367
    %v1369 = vpop.xlane.xlu0 %1368
    %v1370 = vmul.f32 %v1366, %v648
    %v1371 = vmul.f32 %v1369, %v648
    %v1372 = vsub.f32 %v1358, %v1370
    %v1373 = vsub.f32 %v1359, %v1371
    %v1374 = vmul.f32 %v1372, %v1372
    %v1375 = vmul.f32 %v1373, %v1373
    %v1376 = vsel %vm124, %v1374, 0.0
    %1377 = vadd.xlane.f32.xlu0 %v1376
    %v1378 = vpop.xlane.xlu0 %1377
    %v1379 = vsel %vm124, %v1375, 0.0
    %1380 = vadd.xlane.f32.xlu0 %v1379
    %v1381 = vpop.xlane.xlu0 %1380
    %v1382 = vmul.f32 %v1378, %v648
    %v1383 = vmul.f32 %v1381, %v648
    %v1384 = vadd.f32 %v1382, 1e-05
    %v1385 = vadd.f32 %v1383, 1e-05
    %v1386 = vrsqrt.pop %v1384
    %v1387 = vmul.f32 %v1386, %v1384
    %v1388 = vmul.f32 %v1387, %v1386
    %v1389 = vmul.f32 0.5, %v1388
    %v1390 = vsub.f32 1.5, %v1389
    %v1391 = vmul.f32 %v1386, %v1390
    %vm1392 = vweird.f32 %v1384
    %vm1393 = vweird.f32 %v1386
    %vm1394 = vmor %vm1392, %vm1393
    %v1395 = vsel %vm1394, %v1386, %v1391
    %v1396 = vrsqrt.pop %v1385
    %v1397 = vmul.f32 %v1396, %v1385
    %v1398 = vmul.f32 %v1397, %v1396
    %v1399 = vmul.f32 0.5, %v1398
    %v1400 = vsub.f32 1.5, %v1399
    %v1401 = vmul.f32 %v1396, %v1400
    %vm1402 = vweird.f32 %v1385
    %vm1403 = vweird.f32 %v1396
    %vm1404 = vmor %vm1402, %vm1403
    %v1405 = vsel %vm1404, %v1396, %v1401
    %v1406 = vmul.f32 %v1372, %v1395
    %v1407 = vmul.f32 %v1373, %v1405
    %v1409 = vperm.slane %v1361, 0
    %v1411 = vmul.f32 %v1406, %v1409
    %v1412 = vmul.f32 %v1407, %v1409
    %v1414 = vperm.slane %v1363, 0
    %v1416 = vadd.f32 %v1411, %v1414
    %v1417 = vadd.f32 %v1412, %v1414
    %s1418 = scalar_lea.vmem %s11, 32
    %v1419 = vld [vmem:[%s1418] sm:$0xff]
    %v1420 = vld [vmem:[%s1418 + $0x8] sm:$0xff]
    %v1421 = vld [vmem:[%s1418 + $0x10] sm:$0xff]
    %v1422 = vld [vmem:[%s1418 + $0x18] sm:$0xff]
    %s1423 = scalar_lea.vmem %s12, 1
    %v1424 = vld [vmem:[%s1423] sm:$0x1]
    %v1426 = vperm.slane %v1424, 0
    %v1429 = vsel %vm124, %v1416, 0
    %v1432 = vsel %vm124, %v1417, 0
    %1434 = vmatpush.msra.mxu0 0.0
    %1435 = vmatpush.msra.mxu0 0.0
    %1436 = vmatpush.msra.mxu0 0.0
    %1437 = vmatpush.msra.mxu0 0.0
    %1438 = vmatpush.msra.mxu0 0.0
    %1439 = vmatpush.msra.mxu0 0.0
    %1440 = vmatpush.msra.mxu0 0.0
    %1441 = vmatpush.msra.mxu0 0.0
    %1442 = vmatpush.msra.mxu0 0.0
    %1443 = vmatpush.msra.mxu0 0.0
    %1444 = vmatpush.msra.mxu0 0.0
    %1445 = vmatpush.msra.mxu0 0.0
    %1446 = vmatpush.msra.mxu0 %v1422
    %1447 = vmatpush.msra.mxu0 %v1421
    %1448 = vmatpush.msra.mxu0 %v1420
    %1449 = vmatpush.msra.mxu0 %v1419
    %1450 = vmatmul.f32.gmra.mxu0 %v1429
    %v1451 = vpop.f32.mrf.mxu0
    %v1452 = vadd.f32 %v1426, %v1451
    %1453 = vmatmul.f32.gmra.mxu0 %v1432
    %v1454 = vpop.f32.mrf.mxu0
    %v1455 = vadd.f32 %v1426, %v1454
    %1456 = vdwg.mxu0
    %v1457 = vmax.f32 %v1452, 0.0
    %v1458 = vmax.f32 %v1455, 0.0
    %s1459 = scalar_lea.vmem %s13, 128
    %v1460 = vld [vmem:[%s1459] sm:$0xff]
    %v1461 = vld [vmem:[%s1459 + $0x8] sm:$0xff]
    %v1462 = vld [vmem:[%s1459 + $0x10] sm:$0xff]
    %v1463 = vld [vmem:[%s1459 + $0x18] sm:$0xff]
    %v1464 = vld [vmem:[%s1459 + $0x20] sm:$0xff]
    %v1465 = vld [vmem:[%s1459 + $0x28] sm:$0xff]
    %v1466 = vld [vmem:[%s1459 + $0x30] sm:$0xff]
    %v1467 = vld [vmem:[%s1459 + $0x38] sm:$0xff]
    %v1468 = vld [vmem:[%s1459 + $0x40] sm:$0xff]
    %v1469 = vld [vmem:[%s1459 + $0x48] sm:$0xff]
    %v1470 = vld [vmem:[%s1459 + $0x50] sm:$0xff]
    %v1471 = vld [vmem:[%s1459 + $0x58] sm:$0xff]
    %v1472 = vld [vmem:[%s1459 + $0x60] sm:$0xff]
    %v1473 = vld [vmem:[%s1459 + $0x68] sm:$0xff]
    %v1474 = vld [vmem:[%s1459 + $0x70] sm:$0xff]
    %v1475 = vld [vmem:[%s1459 + $0x78] sm:$0xff]
    %s1476 = scalar_lea.vmem %s14, 1
    %v1477 = vld [vmem:[%s1476] sm:$0x1]
    %v1479 = vperm.slane %v1477, 0
    %1481 = vmatpush.msra.mxu0 %v1475
    %1482 = vmatpush.msra.mxu0 %v1474
    %1483 = vmatpush.msra.mxu0 %v1473
    %1484 = vmatpush.msra.mxu0 %v1472
    %1485 = vmatpush.msra.mxu0 %v1471
    %1486 = vmatpush.msra.mxu0 %v1470
    %1487 = vmatpush.msra.mxu0 %v1469
    %1488 = vmatpush.msra.mxu0 %v1468
    %1489 = vmatpush.msra.mxu0 %v1467
    %1490 = vmatpush.msra.mxu0 %v1466
    %1491 = vmatpush.msra.mxu0 %v1465
    %1492 = vmatpush.msra.mxu0 %v1464
    %1493 = vmatpush.msra.mxu0 %v1463
    %1494 = vmatpush.msra.mxu0 %v1462
    %1495 = vmatpush.msra.mxu0 %v1461
    %1496 = vmatpush.msra.mxu0 %v1460
    %1497 = vmatmul.f32.gmra.mxu0 %v1457
    %v1498 = vpop.f32.mrf.mxu0
    %v1499 = vadd.f32 %v1479, %v1498
    %1500 = vmatmul.f32.gmra.mxu0 %v1458
    %v1501 = vpop.f32.mrf.mxu0
    %v1502 = vadd.f32 %v1479, %v1501
    %1503 = vdwg.mxu0
    %v1504 = vadd.f32 %v1416, %v1499
    %v1505 = vadd.f32 %v1417, %v1502
    %s1506 = scalar_lea.vmem %s17, 1
    %v1507 = vld [vmem:[%s1506] sm:$0x1]
    %s1508 = scalar_lea.vmem %s18, 1
    %v1509 = vld [vmem:[%s1508] sm:$0x1]
    %v1510 = vsel %vm124, %v1504, 0.0
    %1511 = vadd.xlane.f32.xlu0 %v1510
    %v1512 = vpop.xlane.xlu0 %1511
    %v1513 = vsel %vm124, %v1505, 0.0
    %1514 = vadd.xlane.f32.xlu0 %v1513
    %v1515 = vpop.xlane.xlu0 %1514
    %v1516 = vmul.f32 %v1512, %v648
    %v1517 = vmul.f32 %v1515, %v648
    %v1518 = vsub.f32 %v1504, %v1516
    %v1519 = vsub.f32 %v1505, %v1517
    %v1520 = vmul.f32 %v1518, %v1518
    %v1521 = vmul.f32 %v1519, %v1519
    %v1522 = vsel %vm124, %v1520, 0.0
    %1523 = vadd.xlane.f32.xlu0 %v1522
    %v1524 = vpop.xlane.xlu0 %1523
    %v1525 = vsel %vm124, %v1521, 0.0
    %1526 = vadd.xlane.f32.xlu0 %v1525
    %v1527 = vpop.xlane.xlu0 %1526
    %v1528 = vmul.f32 %v1524, %v648
    %v1529 = vmul.f32 %v1527, %v648
    %v1530 = vadd.f32 %v1528, 1e-05
    %v1531 = vadd.f32 %v1529, 1e-05
    %v1532 = vrsqrt.pop %v1530
    %v1533 = vmul.f32 %v1532, %v1530
    %v1534 = vmul.f32 %v1533, %v1532
    %v1535 = vmul.f32 0.5, %v1534
    %v1536 = vsub.f32 1.5, %v1535
    %v1537 = vmul.f32 %v1532, %v1536
    %vm1538 = vweird.f32 %v1530
    %vm1539 = vweird.f32 %v1532
    %vm1540 = vmor %vm1538, %vm1539
    %v1541 = vsel %vm1540, %v1532, %v1537
    %v1542 = vrsqrt.pop %v1531
    %v1543 = vmul.f32 %v1542, %v1531
    %v1544 = vmul.f32 %v1543, %v1542
    %v1545 = vmul.f32 0.5, %v1544
    %v1546 = vsub.f32 1.5, %v1545
    %v1547 = vmul.f32 %v1542, %v1546
    %vm1548 = vweird.f32 %v1531
    %vm1549 = vweird.f32 %v1542
    %vm1550 = vmor %vm1548, %vm1549
    %v1551 = vsel %vm1550, %v1542, %v1547
    %v1552 = vmul.f32 %v1518, %v1541
    %v1553 = vmul.f32 %v1519, %v1551
    %v1555 = vperm.slane %v1507, 0
    %v1557 = vmul.f32 %v1552, %v1555
    %v1558 = vmul.f32 %v1553, %v1555
    %v1560 = vperm.slane %v1509, 0
    %v1562 = vadd.f32 %v1557, %v1560
    %v1563 = vadd.f32 %v1558, %v1560
    %v1564 = vsel %vm124, %v1562, 0.0
    %v1565 = vrot.slane %v1564, 4
    %v1566 = vadd.f32 %v1564, %v1565
    %v1567 = vrot.slane %v1566, 2
    %v1568 = vadd.f32 %v1566, %v1567
    %v1569 = vrot.slane %v1568, 1
    %v1570 = vadd.f32 %v1568, %v1569
    %v1571 = vsel %vm124, %v1563, 0.0
    %v1572 = vrot.slane %v1571, 4
    %v1573 = vadd.f32 %v1571, %v1572
    %v1574 = vrot.slane %v1573, 2
    %v1575 = vadd.f32 %v1573, %v1574
    %v1576 = vrot.slane %v1575, 1
    %v1577 = vadd.f32 %v1575, %v1576
    %v1578 = vrcp.pop 8.0
    %v1579 = vmul.f32 8.0, %v1578
    %v1580 = vsub.f32 1.0, %v1579
    %v1581 = vmul.f32 %v1578, %v1580
    %v1582 = vadd.f32 %v1578, %v1581
    %vm1583 = vweird.f32 %v1578
    %v1584 = vsel %vm1583, %v1578, %v1582
    %v1585 = vmul.f32 %v1570, %v1584
    %v1586 = vmul.f32 %v1577, %v1584
    %v1587 = vld [vmem:[%s19] sm:$0xff]
    %v1588 = vld [vmem:[%s19 + $0x8] sm:$0xff]
    %v1589 = vld [vmem:[%s19 + $0x10] sm:$0xff]
    %v1590 = vld [vmem:[%s19 + $0x18] sm:$0xff]
    %v1591 = vld [vmem:[%s20] sm:$0x1]
    %v1593 = vperm.slane %v1591, 0
    %vm1597 = vcmask 1041409
    %v1598 = vsel %vm1597, %v1586, %v1585
    %v1599 = vsel %vm124, %v1598, 0
    %1601 = vmatpush.msra.mxu0 0.0
    %1602 = vmatpush.msra.mxu0 0.0
    %1603 = vmatpush.msra.mxu0 0.0
    %1604 = vmatpush.msra.mxu0 0.0
    %1605 = vmatpush.msra.mxu0 0.0
    %1606 = vmatpush.msra.mxu0 0.0
    %1607 = vmatpush.msra.mxu0 0.0
    %1608 = vmatpush.msra.mxu0 0.0
    %1609 = vmatpush.msra.mxu0 0.0
    %1610 = vmatpush.msra.mxu0 0.0
    %1611 = vmatpush.msra.mxu0 0.0
    %1612 = vmatpush.msra.mxu0 0.0
    %1613 = vmatpush.msra.mxu0 %v1590
    %1614 = vmatpush.msra.mxu0 %v1589
    %1615 = vmatpush.msra.mxu0 %v1588
    %1616 = vmatpush.msra.mxu0 %v1587
    %1617 = vmatmul.f32.gmra.mxu0 %v1599
    %v1618 = vpop.f32.mrf.mxu0
    %v1619 = vadd.f32 %v1593, %v1618
    %1620 = vdwg.mxu0
    %v1621 = vld [vmem:[%s21] sm:$0x1]
    %v1622 = vld [vmem:[%s22] sm:$0x1]
    %vm1623 = vcmask 254976
    %v1624 = vsel %vm1623, %v1619, 0.0
    %1625 = vadd.xlane.f32.xlu0 %v1624
    %v1626 = vpop.xlane.xlu0 %1625
    %v1627 = vmul.f32 %v1626, %v648
    %v1628 = vsub.f32 %v1619, %v1627
    %v1629 = vmul.f32 %v1628, %v1628
    %v1630 = vsel %vm1623, %v1629, 0.0
    %1631 = vadd.xlane.f32.xlu0 %v1630
    %v1632 = vpop.xlane.xlu0 %1631
    %v1633 = vmul.f32 %v1632, %v648
    %v1634 = vadd.f32 %v1633, 1e-05
    %v1635 = vrsqrt.pop %v1634
    %v1636 = vmul.f32 %v1635, %v1634
    %v1637 = vmul.f32 %v1636, %v1635
    %v1638 = vmul.f32 0.5, %v1637
    %v1639 = vsub.f32 1.5, %v1638
    %v1640 = vmul.f32 %v1635, %v1639
    %vm1641 = vweird.f32 %v1634
    %vm1642 = vweird.f32 %v1635
    %vm1643 = vmor %vm1641, %vm1642
    %v1644 = vsel %vm1643, %v1635, %v1640
    %v1645 = vmul.f32 %v1628, %v1644
    %v1647 = vperm.slane %v1621, 0
    %v1649 = vmul.f32 %v1645, %v1647
    %v1651 = vperm.slane %v1622, 0
    %v1653 = vadd.f32 %v1649, %v1651
    %1654 = vst.msk [vmem:[#allocation2] sm:$0x3] %vm1623, %v1653
    // Predicated region
    $region94: #{tpu_custom_call.1} parent=1 // pred_check
      _
    $region95: #{tpu_custom_call.1} parent=1 // pred_check_branch
      %1656 = sbr.rel (0) target = $region97
    $region96: #{tpu_custom_call.1} parent=1 // pred_region
      %1658 = vsyncadd [#allocation3], 0
      %s1660 = sshll.u32 [#allocation2], 4
      %s1661 = int_to_ptr.vmem [resolvable:$true] %s1660
      %s1662 = sshll.u32 %s23, 4
      %s1663 = int_to_ptr.hbm [resolvable:$true] %s1662
      %1665 = dma.vmem_to_hbm [thread:$0]  %s1661, 32, %s1663, [#allocation3]
    $region97: #{tpu_custom_call.1} parent=1 // pred_fallthru
      _
    // Predicated region
    $region98: #{tpu_custom_call.1} parent=1 // pred_check
      _
    $region99: #{tpu_custom_call.1} parent=1 // pred_check_branch
      %1667 = sbr.rel (0) target = $region101
    $region100: #{tpu_custom_call.1} parent=1 // pred_region
      %1669 = dma.done [#allocation3], 32
    $region101: #{tpu_custom_call.1} parent=1 // pred_fallthru
      _
    %1670 = vsyncpa [#allocation3], 1

</llo_original>
